<compile_context>
chip_gen: v5e
topology: v5e:2x2
jax: 0.10.0
libtpu: 0.0.40
codegen_flags: <defaults>
</compile_context>

<pallas_src>
import math
import functools

import jax
import jax.numpy as jnp
from jax import lax
from jax.experimental import pallas as pl
from jax.experimental.pallas import tpu as pltpu


def _mha_kernel(*refs, num_heads, d_k, block_b, seq_len, has_mask):
    """One batch-block per grid step.

    q_in/k_in/v_in : [block_b*S, E] bf16   (batch+seq flattened along rows)
    mask_in        : [block_b, S, S] f32   additive mask (0 keep / -1e9 masked), optional
    wq/wk/wv/wo    : [E, E] bf16           pre-transposed (kernel computes x @ W_t)
                                           wq/bq already carry the 1/sqrt(d_k) scale
    bq/bk/bv/bo    : [1, E] f32
    out_ref        : [block_b*S, E] f32
    """
    if has_mask:
        (q_in, k_in, v_in, mask_in,
         wq, wk, wv, wo, bq, bk, bv, bo, out_ref) = refs
    else:
        mask_in = None
        (q_in, k_in, v_in,
         wq, wk, wv, wo, bq, bk, bv, bo, out_ref) = refs

    f32 = jnp.float32
    bf16 = jnp.bfloat16
    embed = num_heads * d_k

    # Fused Q/K/V projections: one MXU matmul each over all block_b*S rows.
    q = jnp.dot(q_in[...], wq[...], preferred_element_type=f32) + bq[...]
    k = jnp.dot(k_in[...], wk[...], preferred_element_type=f32) + bk[...]
    v = jnp.dot(v_in[...], wv[...], preferred_element_type=f32) + bv[...]
    qb = q.astype(bf16)
    kb = k.astype(bf16)
    vb = v.astype(bf16)

    # Contract last axis of q with last axis of k -> q @ k^T without an XLU transpose.
    qkt_dims = (((1,), (1,)), ((), ()))

    for bi in range(block_b):                 # static unroll over batch elems in block
        r0 = bi * seq_len
        q_rows = qb[r0:r0 + seq_len]          # [S, E] bf16
        k_rows = kb[r0:r0 + seq_len]
        v_rows = vb[r0:r0 + seq_len]
        if has_mask:
            add_mask = mask_in[bi]            # [S, S] f32 additive mask

        acc = jnp.zeros((seq_len, embed), f32)
        for h in range(num_heads):            # static unroll over heads
            c0 = h * d_k
            qh = q_rows[:, c0:c0 + d_k]       # [S, d_k]
            kh = k_rows[:, c0:c0 + d_k]
            vh = v_rows[:, c0:c0 + d_k]

            # [S, S] scores (scale already folded into the Q projection).
            scores = lax.dot_general(qh, kh, qkt_dims, preferred_element_type=f32)
            if has_mask:
                scores = scores + add_mask

            # Numerically stable softmax along the key axis (f32).
            m = jnp.max(scores, axis=-1, keepdims=True)
            e = jnp.exp(scores - m)
            p = e * pl.reciprocal(jnp.sum(e, axis=-1, keepdims=True), approx=True)

            head = jnp.dot(p.astype(bf16), vh, preferred_element_type=f32)  # [S, d_k]
            # Fuse head concat into the output projection: accumulate into Wo row-slab.
            acc = acc + jnp.dot(head.astype(bf16), wo[c0:c0 + d_k, :],
                                preferred_element_type=f32)                 # [S, E]

        out_ref[r0:r0 + seq_len, :] = (acc + bo[...]).astype(out_ref.dtype)


def multi_headed_attention(query, key, value, params, *, num_heads, mask=None,
                           block_b=None):
    """query/key/value: [B, S, E] float32. mask: optional [B, S, S] (1 keep / 0 mask).

    Returns [B, S, E] float32.
    """
    B, S, E = query.shape
    assert E % num_heads == 0
    d_k = E // num_heads

    (wq, bq), (wk, bk), (wv, bv), (wo, bo) = params

    # nn.Linear stores W as [out, in]; pre-transpose so the kernel computes x @ W_t.
    # Fold the 1/sqrt(d_k) score scale into the Q projection (free, done on host).
    scale = 1.0 / math.sqrt(d_k)
    wq_t = (wq.T * scale).astype(jnp.bfloat16)
    wk_t = wk.T.astype(jnp.bfloat16)
    wv_t = wv.T.astype(jnp.bfloat16)
    wo_t = wo.T.astype(jnp.bfloat16)
    bq2 = (bq * scale).reshape(1, E).astype(jnp.float32)
    bk2 = bk.reshape(1, E).astype(jnp.float32)
    bv2 = bv.reshape(1, E).astype(jnp.float32)
    bo2 = bo.reshape(1, E).astype(jnp.float32)

    # Pick a batch block so the projection matmuls get >= ~256 rows when possible.
    if block_b is None:
        block_b = B
        for cand in range(1, B + 1):
            if B % cand == 0 and cand * S >= 256:
                block_b = cand
                break
    assert B % block_b == 0
    grid = (B // block_b,)
    rows = block_b * S

    # Flatten batch+seq into the matmul M dimension; cast activations to bf16
    # (halves HBM traffic, bf16 MXU operands; accumulation stays f32 in-kernel).
    q2 = query.reshape(B * S, E).astype(jnp.bfloat16)
    k2 = key.reshape(B * S, E).astype(jnp.bfloat16)
    v2 = value.reshape(B * S, E).astype(jnp.bfloat16)

    act_spec = pl.BlockSpec((rows, E), lambda b: (b, 0))
    w_spec = pl.BlockSpec((E, E), lambda b: (0, 0))
    b_spec = pl.BlockSpec((1, E), lambda b: (0, 0))
    out_spec = pl.BlockSpec((rows, E), lambda b: (b, 0))

    has_mask = mask is not None
    if has_mask:
        # Additive mask: 0 where keep, -1e9 where mask == 0 (matches masked_fill).
        add_mask = jnp.where(mask == 0, jnp.float32(-1e9), jnp.float32(0.0))
        mask_inputs = (add_mask,)
        mask_specs = [pl.BlockSpec((block_b, S, S), lambda b: (b, 0, 0))]
    else:
        mask_inputs = ()
        mask_specs = []

    kernel = functools.partial(_mha_kernel, num_heads=num_heads, d_k=d_k,
                               block_b=block_b, seq_len=S, has_mask=has_mask)

    out_flat = pl.pallas_call(
        kernel,
        out_shape=jax.ShapeDtypeStruct((B * S, E), jnp.float32),
        grid_spec=pltpu.PrefetchScalarGridSpec(
            num_scalar_prefetch=0,
            grid=grid,
            in_specs=[act_spec, act_spec, act_spec, *mask_specs,
                      w_spec, w_spec, w_spec, w_spec,
                      b_spec, b_spec, b_spec, b_spec],
            out_specs=out_spec,
        ),
        compiler_params=pltpu.CompilerParams(
            dimension_semantics=("parallel",),
            vmem_limit_bytes=48 * 1024 * 1024,
        ),
    )(q2, k2, v2, *mask_inputs, wq_t, wk_t, wv_t, wo_t, bq2, bk2, bv2, bo2)

    return out_flat.reshape(B, S, E).astype(query.dtype)


def _reference(query, key, value, params, *, num_heads, mask=None):
    """Pure-JAX f32 reference mirroring the PyTorch forward (eval mode)."""
    B, S, E = query.shape
    d_k = E // num_heads
    (wq, bq), (wk, bk), (wv, bv), (wo, bo) = params

    def proj(x, w, b):
        y = x @ w.T + b
        return y.reshape(B, S, num_heads, d_k).transpose(0, 2, 1, 3)  # [B,h,S,d_k]

    q, k, v = proj(query, wq, bq), proj(key, wk, bk), proj(value, wv, bv)
    scores = jnp.einsum("bhqd,bhkd->bhqk", q, k) / math.sqrt(d_k)
    if mask is not None:
        scores = jnp.where(mask[:, None] == 0, -1e9, scores)
    p = jax.nn.softmax(scores, axis=-1)
    attn = jnp.einsum("bhqk,bhkd->bhqd", p, v)
    attn = attn.transpose(0, 2, 1, 3).reshape(B, S, E)
    return attn @ wo.T + bo


if __name__ == "__main__":
    B, S, E, H = 2, 8, 32, 4

    key0 = jax.random.PRNGKey(0)
    keys = jax.random.split(key0, 12)

    # deterministic parameter init (4 linear layers: q, k, v, out)
    def lin(kw, kb):
        w = jax.random.normal(kw, (E, E), dtype=jnp.float32) * 0.1
        b = jax.random.normal(kb, (E,), dtype=jnp.float32) * 0.1
        return (w, b)

    params = [lin(keys[2 * i], keys[2 * i + 1]) for i in range(4)]

    query = jax.random.normal(keys[8], (B, S, E), dtype=jnp.float32)
    key_ = jax.random.normal(keys[9], (B, S, E), dtype=jnp.float32)
    value = jax.random.normal(keys[10], (B, S, E), dtype=jnp.float32)

    # bf16 MXU operands + approx-reciprocal softmax => looser tolerance vs f32 reference.
    ATOL = RTOL = 2e-2

    # --- no-mask path (mask is never materialized or DMA'd) ---
    out = jax.block_until_ready(
        multi_headed_attention(query, key_, value, params, num_heads=H))
    ref = _reference(query, key_, value, params, num_heads=H)
    assert out.shape == (B, S, E)
    assert jnp.allclose(out, ref, atol=ATOL, rtol=RTOL), "no-mask mismatch vs reference"

    # --- masked path (causal mask, additive-mask kernel variant) ---
    causal = jnp.tril(jnp.ones((S, S), dtype=jnp.float32))
    mask = jnp.broadcast_to(causal, (B, S, S))
    out_m = jax.block_until_ready(
        multi_headed_attention(query, key_, value, params, num_heads=H, mask=mask))
    ref_m = _reference(query, key_, value, params, num_heads=H, mask=mask)
    assert out_m.shape == (B, S, E)
    assert jnp.allclose(out_m, ref_m, atol=ATOL, rtol=RTOL), "masked mismatch vs reference"

    print("KERNEL_OK")
</pallas_src>

<mosaic_0001>
module attributes {stable_mosaic.version = 11 : i64} {
  func.func @_mha_kernel(%arg0: i32, %arg1: memref<16x32xbf16, #tpu.memory_space<vmem>>, %arg2: memref<16x32xbf16, #tpu.memory_space<vmem>>, %arg3: memref<16x32xbf16, #tpu.memory_space<vmem>>, %arg4: memref<32x32xbf16, #tpu.memory_space<vmem>>, %arg5: memref<32x32xbf16, #tpu.memory_space<vmem>>, %arg6: memref<32x32xbf16, #tpu.memory_space<vmem>>, %arg7: memref<32x32xbf16, #tpu.memory_space<vmem>>, %arg8: memref<1x32xf32, #tpu.memory_space<vmem>>, %arg9: memref<1x32xf32, #tpu.memory_space<vmem>>, %arg10: memref<1x32xf32, #tpu.memory_space<vmem>>, %arg11: memref<1x32xf32, #tpu.memory_space<vmem>>, %arg12: memref<16x32xf32, #tpu.memory_space<vmem>>) attributes {dimension_semantics = [#tpu.dimension_semantics<parallel>], iteration_bounds = array<i64: 1>, scalar_prefetch = 0 : i64, scratch_operands = 0 : i64, tpu.core_type = #tpu.core_type<tc>, window_params = [{transform_indices = @transform_0, window_bounds = array<i64: 16, 32>}, {transform_indices = @transform_1, window_bounds = array<i64: 16, 32>}, {transform_indices = @transform_2, window_bounds = array<i64: 16, 32>}, {pipeline_mode = #tpu.pipeline_mode<synchronous>, transform_indices = @transform_3, window_bounds = array<i64: 32, 32>}, {pipeline_mode = #tpu.pipeline_mode<synchronous>, transform_indices = @transform_4, window_bounds = array<i64: 32, 32>}, {pipeline_mode = #tpu.pipeline_mode<synchronous>, transform_indices = @transform_5, window_bounds = array<i64: 32, 32>}, {pipeline_mode = #tpu.pipeline_mode<synchronous>, transform_indices = @transform_6, window_bounds = array<i64: 32, 32>}, {pipeline_mode = #tpu.pipeline_mode<synchronous>, transform_indices = @transform_7, window_bounds = array<i64: 1, 32>}, {pipeline_mode = #tpu.pipeline_mode<synchronous>, transform_indices = @transform_8, window_bounds = array<i64: 1, 32>}, {pipeline_mode = #tpu.pipeline_mode<synchronous>, transform_indices = @transform_9, window_bounds = array<i64: 1, 32>}, {pipeline_mode = #tpu.pipeline_mode<synchronous>, transform_indices = @transform_10, window_bounds = array<i64: 1, 32>}, {transform_indices = @transform_11, window_bounds = array<i64: 16, 32>}]} {
    %c0 = arith.constant 0 : index
    %c0_0 = arith.constant 0 : index
    %0 = vector.load %arg1[%c0, %c0_0] : memref<16x32xbf16, #tpu.memory_space<vmem>>, vector<16x32xbf16>
    %c0_1 = arith.constant 0 : index
    %c0_2 = arith.constant 0 : index
    %1 = vector.load %arg4[%c0_1, %c0_2] : memref<32x32xbf16, #tpu.memory_space<vmem>>, vector<32x32xbf16>
    %cst = arith.constant dense<0.000000e+00> : vector<16x32xf32>
    %2 = tpu.matmul %0, %1, %cst {dimension_numbers = #tpu.dot_dimension_numbers<[1], [0], [0], [1], [0, 0, 1, 1], [], []>} : vector<16x32xbf16>, vector<32x32xbf16>, vector<16x32xf32> -> vector<16x32xf32>
    %c0_3 = arith.constant 0 : index
    %c0_4 = arith.constant 0 : index
    %3 = vector.load %arg8[%c0_3, %c0_4] : memref<1x32xf32, #tpu.memory_space<vmem>>, vector<1x32xf32>
    %4 = vector.broadcast %3 : vector<1x32xf32> to vector<16x32xf32>
    %5 = arith.addf %2, %4 : vector<16x32xf32>
    %c0_5 = arith.constant 0 : index
    %c0_6 = arith.constant 0 : index
    %6 = vector.load %arg2[%c0_5, %c0_6] : memref<16x32xbf16, #tpu.memory_space<vmem>>, vector<16x32xbf16>
    %c0_7 = arith.constant 0 : index
    %c0_8 = arith.constant 0 : index
    %7 = vector.load %arg5[%c0_7, %c0_8] : memref<32x32xbf16, #tpu.memory_space<vmem>>, vector<32x32xbf16>
    %cst_9 = arith.constant dense<0.000000e+00> : vector<16x32xf32>
    %8 = tpu.matmul %6, %7, %cst_9 {dimension_numbers = #tpu.dot_dimension_numbers<[1], [0], [0], [1], [0, 0, 1, 1], [], []>} : vector<16x32xbf16>, vector<32x32xbf16>, vector<16x32xf32> -> vector<16x32xf32>
    %c0_10 = arith.constant 0 : index
    %c0_11 = arith.constant 0 : index
    %9 = vector.load %arg9[%c0_10, %c0_11] : memref<1x32xf32, #tpu.memory_space<vmem>>, vector<1x32xf32>
    %10 = vector.broadcast %9 : vector<1x32xf32> to vector<16x32xf32>
    %11 = arith.addf %8, %10 : vector<16x32xf32>
    %c0_12 = arith.constant 0 : index
    %c0_13 = arith.constant 0 : index
    %12 = vector.load %arg3[%c0_12, %c0_13] : memref<16x32xbf16, #tpu.memory_space<vmem>>, vector<16x32xbf16>
    %c0_14 = arith.constant 0 : index
    %c0_15 = arith.constant 0 : index
    %13 = vector.load %arg6[%c0_14, %c0_15] : memref<32x32xbf16, #tpu.memory_space<vmem>>, vector<32x32xbf16>
    %cst_16 = arith.constant dense<0.000000e+00> : vector<16x32xf32>
    %14 = tpu.matmul %12, %13, %cst_16 {dimension_numbers = #tpu.dot_dimension_numbers<[1], [0], [0], [1], [0, 0, 1, 1], [], []>} : vector<16x32xbf16>, vector<32x32xbf16>, vector<16x32xf32> -> vector<16x32xf32>
    %c0_17 = arith.constant 0 : index
    %c0_18 = arith.constant 0 : index
    %15 = vector.load %arg10[%c0_17, %c0_18] : memref<1x32xf32, #tpu.memory_space<vmem>>, vector<1x32xf32>
    %16 = vector.broadcast %15 : vector<1x32xf32> to vector<16x32xf32>
    %17 = arith.addf %14, %16 : vector<16x32xf32>
    %18 = arith.truncf %5 : vector<16x32xf32> to vector<16x32xbf16>
    %19 = arith.truncf %11 : vector<16x32xf32> to vector<16x32xbf16>
    %20 = arith.truncf %17 : vector<16x32xf32> to vector<16x32xbf16>
    %21 = vector.extract_strided_slice %18 {offsets = [0, 0], sizes = [8, 32], strides = [1, 1]} : vector<16x32xbf16> to vector<8x32xbf16>
    %22 = vector.extract_strided_slice %19 {offsets = [0, 0], sizes = [8, 32], strides = [1, 1]} : vector<16x32xbf16> to vector<8x32xbf16>
    %23 = vector.extract_strided_slice %20 {offsets = [0, 0], sizes = [8, 32], strides = [1, 1]} : vector<16x32xbf16> to vector<8x32xbf16>
    %cst_19 = arith.constant 0.000000e+00 : f32
    %24 = vector.broadcast %cst_19 : f32 to vector<8x32xf32>
    %25 = vector.extract_strided_slice %21 {offsets = [0, 0], sizes = [8, 8], strides = [1, 1]} : vector<8x32xbf16> to vector<8x8xbf16>
    %26 = vector.extract_strided_slice %22 {offsets = [0, 0], sizes = [8, 8], strides = [1, 1]} : vector<8x32xbf16> to vector<8x8xbf16>
    %27 = vector.extract_strided_slice %23 {offsets = [0, 0], sizes = [8, 8], strides = [1, 1]} : vector<8x32xbf16> to vector<8x8xbf16>
    %cst_20 = arith.constant dense<0.000000e+00> : vector<8x8xf32>
    %28 = tpu.matmul %25, %26, %cst_20 {dimension_numbers = #tpu.dot_dimension_numbers<[1], [1], [0], [0], [0, 0, 1, 0], [], []>} : vector<8x8xbf16>, vector<8x8xbf16>, vector<8x8xf32> -> vector<8x8xf32>
    %cst_21 = arith.constant dense<0xFF800000> : vector<8xf32>
    %29 = vector.multi_reduction <maximumf>, %28, %cst_21 [1] : vector<8x8xf32> to vector<8xf32>
    %30 = vector.shape_cast %29 : vector<8xf32> to vector<8x1xf32>
    %31 = vector.broadcast %30 : vector<8x1xf32> to vector<8x8xf32>
    %32 = arith.subf %28, %31 : vector<8x8xf32>
    %33 = math.exp %32 : vector<8x8xf32>
    %cst_22 = arith.constant dense<0.000000e+00> : vector<8xf32>
    %34 = vector.multi_reduction <add>, %33, %cst_22 [1] : vector<8x8xf32> to vector<8xf32>
    %35 = vector.shape_cast %34 : vector<8xf32> to vector<8x1xf32>
    %36 = tpu.reciprocal %35 {approx = true} : vector<8x1xf32> -> vector<8x1xf32>
    %37 = vector.broadcast %36 : vector<8x1xf32> to vector<8x8xf32>
    %38 = arith.mulf %33, %37 : vector<8x8xf32>
    %39 = arith.truncf %38 : vector<8x8xf32> to vector<8x8xbf16>
    %cst_23 = arith.constant dense<0.000000e+00> : vector<8x8xf32>
    %40 = tpu.matmul %39, %27, %cst_23 {dimension_numbers = #tpu.dot_dimension_numbers<[1], [0], [0], [1], [0, 0, 1, 1], [], []>} : vector<8x8xbf16>, vector<8x8xbf16>, vector<8x8xf32> -> vector<8x8xf32>
    %41 = arith.truncf %40 : vector<8x8xf32> to vector<8x8xbf16>
    %c0_24 = arith.constant 0 : index
    %c0_25 = arith.constant 0 : index
    %42 = vector.load %arg7[%c0_24, %c0_25] : memref<32x32xbf16, #tpu.memory_space<vmem>>, vector<8x32xbf16>
    %cst_26 = arith.constant dense<0.000000e+00> : vector<8x32xf32>
    %43 = tpu.matmul %41, %42, %cst_26 {dimension_numbers = #tpu.dot_dimension_numbers<[1], [0], [0], [1], [0, 0, 1, 1], [], []>} : vector<8x8xbf16>, vector<8x32xbf16>, vector<8x32xf32> -> vector<8x32xf32>
    %44 = arith.addf %24, %43 : vector<8x32xf32>
    %45 = vector.extract_strided_slice %21 {offsets = [0, 8], sizes = [8, 8], strides = [1, 1]} : vector<8x32xbf16> to vector<8x8xbf16>
    %46 = vector.extract_strided_slice %22 {offsets = [0, 8], sizes = [8, 8], strides = [1, 1]} : vector<8x32xbf16> to vector<8x8xbf16>
    %47 = vector.extract_strided_slice %23 {offsets = [0, 8], sizes = [8, 8], strides = [1, 1]} : vector<8x32xbf16> to vector<8x8xbf16>
    %cst_27 = arith.constant dense<0.000000e+00> : vector<8x8xf32>
    %48 = tpu.matmul %45, %46, %cst_27 {dimension_numbers = #tpu.dot_dimension_numbers<[1], [1], [0], [0], [0, 0, 1, 0], [], []>} : vector<8x8xbf16>, vector<8x8xbf16>, vector<8x8xf32> -> vector<8x8xf32>
    %cst_28 = arith.constant dense<0xFF800000> : vector<8xf32>
    %49 = vector.multi_reduction <maximumf>, %48, %cst_28 [1] : vector<8x8xf32> to vector<8xf32>
    %50 = vector.shape_cast %49 : vector<8xf32> to vector<8x1xf32>
    %51 = vector.broadcast %50 : vector<8x1xf32> to vector<8x8xf32>
    %52 = arith.subf %48, %51 : vector<8x8xf32>
    %53 = math.exp %52 : vector<8x8xf32>
    %cst_29 = arith.constant dense<0.000000e+00> : vector<8xf32>
    %54 = vector.multi_reduction <add>, %53, %cst_29 [1] : vector<8x8xf32> to vector<8xf32>
    %55 = vector.shape_cast %54 : vector<8xf32> to vector<8x1xf32>
    %56 = tpu.reciprocal %55 {approx = true} : vector<8x1xf32> -> vector<8x1xf32>
    %57 = vector.broadcast %56 : vector<8x1xf32> to vector<8x8xf32>
    %58 = arith.mulf %53, %57 : vector<8x8xf32>
    %59 = arith.truncf %58 : vector<8x8xf32> to vector<8x8xbf16>
    %cst_30 = arith.constant dense<0.000000e+00> : vector<8x8xf32>
    %60 = tpu.matmul %59, %47, %cst_30 {dimension_numbers = #tpu.dot_dimension_numbers<[1], [0], [0], [1], [0, 0, 1, 1], [], []>} : vector<8x8xbf16>, vector<8x8xbf16>, vector<8x8xf32> -> vector<8x8xf32>
    %61 = arith.truncf %60 : vector<8x8xf32> to vector<8x8xbf16>
    %c8 = arith.constant 8 : index
    %c0_31 = arith.constant 0 : index
    %62 = vector.load %arg7[%c8, %c0_31] : memref<32x32xbf16, #tpu.memory_space<vmem>>, vector<8x32xbf16>
    %cst_32 = arith.constant dense<0.000000e+00> : vector<8x32xf32>
    %63 = tpu.matmul %61, %62, %cst_32 {dimension_numbers = #tpu.dot_dimension_numbers<[1], [0], [0], [1], [0, 0, 1, 1], [], []>} : vector<8x8xbf16>, vector<8x32xbf16>, vector<8x32xf32> -> vector<8x32xf32>
    %64 = arith.addf %44, %63 : vector<8x32xf32>
    %65 = vector.extract_strided_slice %21 {offsets = [0, 16], sizes = [8, 8], strides = [1, 1]} : vector<8x32xbf16> to vector<8x8xbf16>
    %66 = vector.extract_strided_slice %22 {offsets = [0, 16], sizes = [8, 8], strides = [1, 1]} : vector<8x32xbf16> to vector<8x8xbf16>
    %67 = vector.extract_strided_slice %23 {offsets = [0, 16], sizes = [8, 8], strides = [1, 1]} : vector<8x32xbf16> to vector<8x8xbf16>
    %cst_33 = arith.constant dense<0.000000e+00> : vector<8x8xf32>
    %68 = tpu.matmul %65, %66, %cst_33 {dimension_numbers = #tpu.dot_dimension_numbers<[1], [1], [0], [0], [0, 0, 1, 0], [], []>} : vector<8x8xbf16>, vector<8x8xbf16>, vector<8x8xf32> -> vector<8x8xf32>
    %cst_34 = arith.constant dense<0xFF800000> : vector<8xf32>
    %69 = vector.multi_reduction <maximumf>, %68, %cst_34 [1] : vector<8x8xf32> to vector<8xf32>
    %70 = vector.shape_cast %69 : vector<8xf32> to vector<8x1xf32>
    %71 = vector.broadcast %70 : vector<8x1xf32> to vector<8x8xf32>
    %72 = arith.subf %68, %71 : vector<8x8xf32>
    %73 = math.exp %72 : vector<8x8xf32>
    %cst_35 = arith.constant dense<0.000000e+00> : vector<8xf32>
    %74 = vector.multi_reduction <add>, %73, %cst_35 [1] : vector<8x8xf32> to vector<8xf32>
    %75 = vector.shape_cast %74 : vector<8xf32> to vector<8x1xf32>
    %76 = tpu.reciprocal %75 {approx = true} : vector<8x1xf32> -> vector<8x1xf32>
    %77 = vector.broadcast %76 : vector<8x1xf32> to vector<8x8xf32>
    %78 = arith.mulf %73, %77 : vector<8x8xf32>
    %79 = arith.truncf %78 : vector<8x8xf32> to vector<8x8xbf16>
    %cst_36 = arith.constant dense<0.000000e+00> : vector<8x8xf32>
    %80 = tpu.matmul %79, %67, %cst_36 {dimension_numbers = #tpu.dot_dimension_numbers<[1], [0], [0], [1], [0, 0, 1, 1], [], []>} : vector<8x8xbf16>, vector<8x8xbf16>, vector<8x8xf32> -> vector<8x8xf32>
    %81 = arith.truncf %80 : vector<8x8xf32> to vector<8x8xbf16>
    %c16 = arith.constant 16 : index
    %c0_37 = arith.constant 0 : index
    %82 = vector.load %arg7[%c16, %c0_37] : memref<32x32xbf16, #tpu.memory_space<vmem>>, vector<8x32xbf16>
    %cst_38 = arith.constant dense<0.000000e+00> : vector<8x32xf32>
    %83 = tpu.matmul %81, %82, %cst_38 {dimension_numbers = #tpu.dot_dimension_numbers<[1], [0], [0], [1], [0, 0, 1, 1], [], []>} : vector<8x8xbf16>, vector<8x32xbf16>, vector<8x32xf32> -> vector<8x32xf32>
    %84 = arith.addf %64, %83 : vector<8x32xf32>
    %85 = vector.extract_strided_slice %21 {offsets = [0, 24], sizes = [8, 8], strides = [1, 1]} : vector<8x32xbf16> to vector<8x8xbf16>
    %86 = vector.extract_strided_slice %22 {offsets = [0, 24], sizes = [8, 8], strides = [1, 1]} : vector<8x32xbf16> to vector<8x8xbf16>
    %87 = vector.extract_strided_slice %23 {offsets = [0, 24], sizes = [8, 8], strides = [1, 1]} : vector<8x32xbf16> to vector<8x8xbf16>
    %cst_39 = arith.constant dense<0.000000e+00> : vector<8x8xf32>
    %88 = tpu.matmul %85, %86, %cst_39 {dimension_numbers = #tpu.dot_dimension_numbers<[1], [1], [0], [0], [0, 0, 1, 0], [], []>} : vector<8x8xbf16>, vector<8x8xbf16>, vector<8x8xf32> -> vector<8x8xf32>
    %cst_40 = arith.constant dense<0xFF800000> : vector<8xf32>
    %89 = vector.multi_reduction <maximumf>, %88, %cst_40 [1] : vector<8x8xf32> to vector<8xf32>
    %90 = vector.shape_cast %89 : vector<8xf32> to vector<8x1xf32>
    %91 = vector.broadcast %90 : vector<8x1xf32> to vector<8x8xf32>
    %92 = arith.subf %88, %91 : vector<8x8xf32>
    %93 = math.exp %92 : vector<8x8xf32>
    %cst_41 = arith.constant dense<0.000000e+00> : vector<8xf32>
    %94 = vector.multi_reduction <add>, %93, %cst_41 [1] : vector<8x8xf32> to vector<8xf32>
    %95 = vector.shape_cast %94 : vector<8xf32> to vector<8x1xf32>
    %96 = tpu.reciprocal %95 {approx = true} : vector<8x1xf32> -> vector<8x1xf32>
    %97 = vector.broadcast %96 : vector<8x1xf32> to vector<8x8xf32>
    %98 = arith.mulf %93, %97 : vector<8x8xf32>
    %99 = arith.truncf %98 : vector<8x8xf32> to vector<8x8xbf16>
    %cst_42 = arith.constant dense<0.000000e+00> : vector<8x8xf32>
    %100 = tpu.matmul %99, %87, %cst_42 {dimension_numbers = #tpu.dot_dimension_numbers<[1], [0], [0], [1], [0, 0, 1, 1], [], []>} : vector<8x8xbf16>, vector<8x8xbf16>, vector<8x8xf32> -> vector<8x8xf32>
    %101 = arith.truncf %100 : vector<8x8xf32> to vector<8x8xbf16>
    %c24 = arith.constant 24 : index
    %c0_43 = arith.constant 0 : index
    %102 = vector.load %arg7[%c24, %c0_43] : memref<32x32xbf16, #tpu.memory_space<vmem>>, vector<8x32xbf16>
    %cst_44 = arith.constant dense<0.000000e+00> : vector<8x32xf32>
    %103 = tpu.matmul %101, %102, %cst_44 {dimension_numbers = #tpu.dot_dimension_numbers<[1], [0], [0], [1], [0, 0, 1, 1], [], []>} : vector<8x8xbf16>, vector<8x32xbf16>, vector<8x32xf32> -> vector<8x32xf32>
    %104 = arith.addf %84, %103 : vector<8x32xf32>
    %c0_45 = arith.constant 0 : index
    %c0_46 = arith.constant 0 : index
    %105 = vector.load %arg11[%c0_45, %c0_46] : memref<1x32xf32, #tpu.memory_space<vmem>>, vector<1x32xf32>
    %106 = vector.broadcast %105 : vector<1x32xf32> to vector<8x32xf32>
    %107 = arith.addf %104, %106 : vector<8x32xf32>
    %c0_47 = arith.constant 0 : index
    %c0_48 = arith.constant 0 : index
    %108 = vector.load %arg12[%c0_47, %c0_48] : memref<16x32xf32, #tpu.memory_space<vmem>>, vector<8x32xf32>
    tpu.vector_store %arg12[%c0_47, %c0_48], %107 {strides = array<i32>} : memref<16x32xf32, #tpu.memory_space<vmem>>, vector<8x32xf32>,
    %109 = vector.extract_strided_slice %18 {offsets = [8, 0], sizes = [8, 32], strides = [1, 1]} : vector<16x32xbf16> to vector<8x32xbf16>
    %110 = vector.extract_strided_slice %19 {offsets = [8, 0], sizes = [8, 32], strides = [1, 1]} : vector<16x32xbf16> to vector<8x32xbf16>
    %111 = vector.extract_strided_slice %20 {offsets = [8, 0], sizes = [8, 32], strides = [1, 1]} : vector<16x32xbf16> to vector<8x32xbf16>
    %cst_49 = arith.constant 0.000000e+00 : f32
    %112 = vector.broadcast %cst_49 : f32 to vector<8x32xf32>
    %113 = vector.extract_strided_slice %109 {offsets = [0, 0], sizes = [8, 8], strides = [1, 1]} : vector<8x32xbf16> to vector<8x8xbf16>
    %114 = vector.extract_strided_slice %110 {offsets = [0, 0], sizes = [8, 8], strides = [1, 1]} : vector<8x32xbf16> to vector<8x8xbf16>
    %115 = vector.extract_strided_slice %111 {offsets = [0, 0], sizes = [8, 8], strides = [1, 1]} : vector<8x32xbf16> to vector<8x8xbf16>
    %cst_50 = arith.constant dense<0.000000e+00> : vector<8x8xf32>
    %116 = tpu.matmul %113, %114, %cst_50 {dimension_numbers = #tpu.dot_dimension_numbers<[1], [1], [0], [0], [0, 0, 1, 0], [], []>} : vector<8x8xbf16>, vector<8x8xbf16>, vector<8x8xf32> -> vector<8x8xf32>
    %cst_51 = arith.constant dense<0xFF800000> : vector<8xf32>
    %117 = vector.multi_reduction <maximumf>, %116, %cst_51 [1] : vector<8x8xf32> to vector<8xf32>
    %118 = vector.shape_cast %117 : vector<8xf32> to vector<8x1xf32>
    %119 = vector.broadcast %118 : vector<8x1xf32> to vector<8x8xf32>
    %120 = arith.subf %116, %119 : vector<8x8xf32>
    %121 = math.exp %120 : vector<8x8xf32>
    %cst_52 = arith.constant dense<0.000000e+00> : vector<8xf32>
    %122 = vector.multi_reduction <add>, %121, %cst_52 [1] : vector<8x8xf32> to vector<8xf32>
    %123 = vector.shape_cast %122 : vector<8xf32> to vector<8x1xf32>
    %124 = tpu.reciprocal %123 {approx = true} : vector<8x1xf32> -> vector<8x1xf32>
    %125 = vector.broadcast %124 : vector<8x1xf32> to vector<8x8xf32>
    %126 = arith.mulf %121, %125 : vector<8x8xf32>
    %127 = arith.truncf %126 : vector<8x8xf32> to vector<8x8xbf16>
    %cst_53 = arith.constant dense<0.000000e+00> : vector<8x8xf32>
    %128 = tpu.matmul %127, %115, %cst_53 {dimension_numbers = #tpu.dot_dimension_numbers<[1], [0], [0], [1], [0, 0, 1, 1], [], []>} : vector<8x8xbf16>, vector<8x8xbf16>, vector<8x8xf32> -> vector<8x8xf32>
    %129 = arith.truncf %128 : vector<8x8xf32> to vector<8x8xbf16>
    %c0_54 = arith.constant 0 : index
    %c0_55 = arith.constant 0 : index
    %130 = vector.load %arg7[%c0_54, %c0_55] : memref<32x32xbf16, #tpu.memory_space<vmem>>, vector<8x32xbf16>
    %cst_56 = arith.constant dense<0.000000e+00> : vector<8x32xf32>
    %131 = tpu.matmul %129, %130, %cst_56 {dimension_numbers = #tpu.dot_dimension_numbers<[1], [0], [0], [1], [0, 0, 1, 1], [], []>} : vector<8x8xbf16>, vector<8x32xbf16>, vector<8x32xf32> -> vector<8x32xf32>
    %132 = arith.addf %112, %131 : vector<8x32xf32>
    %133 = vector.extract_strided_slice %109 {offsets = [0, 8], sizes = [8, 8], strides = [1, 1]} : vector<8x32xbf16> to vector<8x8xbf16>
    %134 = vector.extract_strided_slice %110 {offsets = [0, 8], sizes = [8, 8], strides = [1, 1]} : vector<8x32xbf16> to vector<8x8xbf16>
    %135 = vector.extract_strided_slice %111 {offsets = [0, 8], sizes = [8, 8], strides = [1, 1]} : vector<8x32xbf16> to vector<8x8xbf16>
    %cst_57 = arith.constant dense<0.000000e+00> : vector<8x8xf32>
    %136 = tpu.matmul %133, %134, %cst_57 {dimension_numbers = #tpu.dot_dimension_numbers<[1], [1], [0], [0], [0, 0, 1, 0], [], []>} : vector<8x8xbf16>, vector<8x8xbf16>, vector<8x8xf32> -> vector<8x8xf32>
    %cst_58 = arith.constant dense<0xFF800000> : vector<8xf32>
    %137 = vector.multi_reduction <maximumf>, %136, %cst_58 [1] : vector<8x8xf32> to vector<8xf32>
    %138 = vector.shape_cast %137 : vector<8xf32> to vector<8x1xf32>
    %139 = vector.broadcast %138 : vector<8x1xf32> to vector<8x8xf32>
    %140 = arith.subf %136, %139 : vector<8x8xf32>
    %141 = math.exp %140 : vector<8x8xf32>
    %cst_59 = arith.constant dense<0.000000e+00> : vector<8xf32>
    %142 = vector.multi_reduction <add>, %141, %cst_59 [1] : vector<8x8xf32> to vector<8xf32>
    %143 = vector.shape_cast %142 : vector<8xf32> to vector<8x1xf32>
    %144 = tpu.reciprocal %143 {approx = true} : vector<8x1xf32> -> vector<8x1xf32>
    %145 = vector.broadcast %144 : vector<8x1xf32> to vector<8x8xf32>
    %146 = arith.mulf %141, %145 : vector<8x8xf32>
    %147 = arith.truncf %146 : vector<8x8xf32> to vector<8x8xbf16>
    %cst_60 = arith.constant dense<0.000000e+00> : vector<8x8xf32>
    %148 = tpu.matmul %147, %135, %cst_60 {dimension_numbers = #tpu.dot_dimension_numbers<[1], [0], [0], [1], [0, 0, 1, 1], [], []>} : vector<8x8xbf16>, vector<8x8xbf16>, vector<8x8xf32> -> vector<8x8xf32>
    %149 = arith.truncf %148 : vector<8x8xf32> to vector<8x8xbf16>
    %c8_61 = arith.constant 8 : index
    %c0_62 = arith.constant 0 : index
    %150 = vector.load %arg7[%c8_61, %c0_62] : memref<32x32xbf16, #tpu.memory_space<vmem>>, vector<8x32xbf16>
    %cst_63 = arith.constant dense<0.000000e+00> : vector<8x32xf32>
    %151 = tpu.matmul %149, %150, %cst_63 {dimension_numbers = #tpu.dot_dimension_numbers<[1], [0], [0], [1], [0, 0, 1, 1], [], []>} : vector<8x8xbf16>, vector<8x32xbf16>, vector<8x32xf32> -> vector<8x32xf32>
    %152 = arith.addf %132, %151 : vector<8x32xf32>
    %153 = vector.extract_strided_slice %109 {offsets = [0, 16], sizes = [8, 8], strides = [1, 1]} : vector<8x32xbf16> to vector<8x8xbf16>
    %154 = vector.extract_strided_slice %110 {offsets = [0, 16], sizes = [8, 8], strides = [1, 1]} : vector<8x32xbf16> to vector<8x8xbf16>
    %155 = vector.extract_strided_slice %111 {offsets = [0, 16], sizes = [8, 8], strides = [1, 1]} : vector<8x32xbf16> to vector<8x8xbf16>
    %cst_64 = arith.constant dense<0.000000e+00> : vector<8x8xf32>
    %156 = tpu.matmul %153, %154, %cst_64 {dimension_numbers = #tpu.dot_dimension_numbers<[1], [1], [0], [0], [0, 0, 1, 0], [], []>} : vector<8x8xbf16>, vector<8x8xbf16>, vector<8x8xf32> -> vector<8x8xf32>
    %cst_65 = arith.constant dense<0xFF800000> : vector<8xf32>
    %157 = vector.multi_reduction <maximumf>, %156, %cst_65 [1] : vector<8x8xf32> to vector<8xf32>
    %158 = vector.shape_cast %157 : vector<8xf32> to vector<8x1xf32>
    %159 = vector.broadcast %158 : vector<8x1xf32> to vector<8x8xf32>
    %160 = arith.subf %156, %159 : vector<8x8xf32>
    %161 = math.exp %160 : vector<8x8xf32>
    %cst_66 = arith.constant dense<0.000000e+00> : vector<8xf32>
    %162 = vector.multi_reduction <add>, %161, %cst_66 [1] : vector<8x8xf32> to vector<8xf32>
    %163 = vector.shape_cast %162 : vector<8xf32> to vector<8x1xf32>
    %164 = tpu.reciprocal %163 {approx = true} : vector<8x1xf32> -> vector<8x1xf32>
    %165 = vector.broadcast %164 : vector<8x1xf32> to vector<8x8xf32>
    %166 = arith.mulf %161, %165 : vector<8x8xf32>
    %167 = arith.truncf %166 : vector<8x8xf32> to vector<8x8xbf16>
    %cst_67 = arith.constant dense<0.000000e+00> : vector<8x8xf32>
    %168 = tpu.matmul %167, %155, %cst_67 {dimension_numbers = #tpu.dot_dimension_numbers<[1], [0], [0], [1], [0, 0, 1, 1], [], []>} : vector<8x8xbf16>, vector<8x8xbf16>, vector<8x8xf32> -> vector<8x8xf32>
    %169 = arith.truncf %168 : vector<8x8xf32> to vector<8x8xbf16>
    %c16_68 = arith.constant 16 : index
    %c0_69 = arith.constant 0 : index
    %170 = vector.load %arg7[%c16_68, %c0_69] : memref<32x32xbf16, #tpu.memory_space<vmem>>, vector<8x32xbf16>
    %cst_70 = arith.constant dense<0.000000e+00> : vector<8x32xf32>
    %171 = tpu.matmul %169, %170, %cst_70 {dimension_numbers = #tpu.dot_dimension_numbers<[1], [0], [0], [1], [0, 0, 1, 1], [], []>} : vector<8x8xbf16>, vector<8x32xbf16>, vector<8x32xf32> -> vector<8x32xf32>
    %172 = arith.addf %152, %171 : vector<8x32xf32>
    %173 = vector.extract_strided_slice %109 {offsets = [0, 24], sizes = [8, 8], strides = [1, 1]} : vector<8x32xbf16> to vector<8x8xbf16>
    %174 = vector.extract_strided_slice %110 {offsets = [0, 24], sizes = [8, 8], strides = [1, 1]} : vector<8x32xbf16> to vector<8x8xbf16>
    %175 = vector.extract_strided_slice %111 {offsets = [0, 24], sizes = [8, 8], strides = [1, 1]} : vector<8x32xbf16> to vector<8x8xbf16>
    %cst_71 = arith.constant dense<0.000000e+00> : vector<8x8xf32>
    %176 = tpu.matmul %173, %174, %cst_71 {dimension_numbers = #tpu.dot_dimension_numbers<[1], [1], [0], [0], [0, 0, 1, 0], [], []>} : vector<8x8xbf16>, vector<8x8xbf16>, vector<8x8xf32> -> vector<8x8xf32>
    %cst_72 = arith.constant dense<0xFF800000> : vector<8xf32>
    %177 = vector.multi_reduction <maximumf>, %176, %cst_72 [1] : vector<8x8xf32> to vector<8xf32>
    %178 = vector.shape_cast %177 : vector<8xf32> to vector<8x1xf32>
    %179 = vector.broadcast %178 : vector<8x1xf32> to vector<8x8xf32>
    %180 = arith.subf %176, %179 : vector<8x8xf32>
    %181 = math.exp %180 : vector<8x8xf32>
    %cst_73 = arith.constant dense<0.000000e+00> : vector<8xf32>
    %182 = vector.multi_reduction <add>, %181, %cst_73 [1] : vector<8x8xf32> to vector<8xf32>
    %183 = vector.shape_cast %182 : vector<8xf32> to vector<8x1xf32>
    %184 = tpu.reciprocal %183 {approx = true} : vector<8x1xf32> -> vector<8x1xf32>
    %185 = vector.broadcast %184 : vector<8x1xf32> to vector<8x8xf32>
    %186 = arith.mulf %181, %185 : vector<8x8xf32>
    %187 = arith.truncf %186 : vector<8x8xf32> to vector<8x8xbf16>
    %cst_74 = arith.constant dense<0.000000e+00> : vector<8x8xf32>
    %188 = tpu.matmul %187, %175, %cst_74 {dimension_numbers = #tpu.dot_dimension_numbers<[1], [0], [0], [1], [0, 0, 1, 1], [], []>} : vector<8x8xbf16>, vector<8x8xbf16>, vector<8x8xf32> -> vector<8x8xf32>
    %189 = arith.truncf %188 : vector<8x8xf32> to vector<8x8xbf16>
    %c24_75 = arith.constant 24 : index
    %c0_76 = arith.constant 0 : index
    %190 = vector.load %arg7[%c24_75, %c0_76] : memref<32x32xbf16, #tpu.memory_space<vmem>>, vector<8x32xbf16>
    %cst_77 = arith.constant dense<0.000000e+00> : vector<8x32xf32>
    %191 = tpu.matmul %189, %190, %cst_77 {dimension_numbers = #tpu.dot_dimension_numbers<[1], [0], [0], [1], [0, 0, 1, 1], [], []>} : vector<8x8xbf16>, vector<8x32xbf16>, vector<8x32xf32> -> vector<8x32xf32>
    %192 = arith.addf %172, %191 : vector<8x32xf32>
    %c0_78 = arith.constant 0 : index
    %c0_79 = arith.constant 0 : index
    %193 = vector.load %arg11[%c0_78, %c0_79] : memref<1x32xf32, #tpu.memory_space<vmem>>, vector<1x32xf32>
    %194 = vector.broadcast %193 : vector<1x32xf32> to vector<8x32xf32>
    %195 = arith.addf %192, %194 : vector<8x32xf32>
    %c8_80 = arith.constant 8 : index
    %c0_81 = arith.constant 0 : index
    %196 = vector.load %arg12[%c8_80, %c0_81] : memref<16x32xf32, #tpu.memory_space<vmem>>, vector<8x32xf32>
    tpu.vector_store %arg12[%c8_80, %c0_81], %195 {strides = array<i32>} : memref<16x32xf32, #tpu.memory_space<vmem>>, vector<8x32xf32>,
    return
  }
  func.func @transform_0(%arg0: i32) -> (i32, i32) {
    %c0_i32 = arith.constant 0 : i32
    %c0_i32_0 = arith.constant 0 : i32
    return %arg0, %c0_i32 : i32, i32
  }
  func.func @transform_1(%arg0: i32) -> (i32, i32) {
    %c0_i32 = arith.constant 0 : i32
    %c0_i32_0 = arith.constant 0 : i32
    return %arg0, %c0_i32 : i32, i32
  }
  func.func @transform_2(%arg0: i32) -> (i32, i32) {
    %c0_i32 = arith.constant 0 : i32
    %c0_i32_0 = arith.constant 0 : i32
    return %arg0, %c0_i32 : i32, i32
  }
  func.func @transform_3(%arg0: i32) -> (i32, i32) {
    %c0_i32 = arith.constant 0 : i32
    %c0_i32_0 = arith.constant 0 : i32
    %c0_i32_1 = arith.constant 0 : i32
    return %c0_i32, %c0_i32_0 : i32, i32
  }
  func.func @transform_4(%arg0: i32) -> (i32, i32) {
    %c0_i32 = arith.constant 0 : i32
    %c0_i32_0 = arith.constant 0 : i32
    %c0_i32_1 = arith.constant 0 : i32
    return %c0_i32, %c0_i32_0 : i32, i32
  }
  func.func @transform_5(%arg0: i32) -> (i32, i32) {
    %c0_i32 = arith.constant 0 : i32
    %c0_i32_0 = arith.constant 0 : i32
    %c0_i32_1 = arith.constant 0 : i32
    return %c0_i32, %c0_i32_0 : i32, i32
  }
  func.func @transform_6(%arg0: i32) -> (i32, i32) {
    %c0_i32 = arith.constant 0 : i32
    %c0_i32_0 = arith.constant 0 : i32
    %c0_i32_1 = arith.constant 0 : i32
    return %c0_i32, %c0_i32_0 : i32, i32
  }
  func.func @transform_7(%arg0: i32) -> (i32, i32) {
    %c0_i32 = arith.constant 0 : i32
    %c0_i32_0 = arith.constant 0 : i32
    %c0_i32_1 = arith.constant 0 : i32
    return %c0_i32, %c0_i32_0 : i32, i32
  }
  func.func @transform_8(%arg0: i32) -> (i32, i32) {
    %c0_i32 = arith.constant 0 : i32
    %c0_i32_0 = arith.constant 0 : i32
    %c0_i32_1 = arith.constant 0 : i32
    return %c0_i32, %c0_i32_0 : i32, i32
  }
  func.func @transform_9(%arg0: i32) -> (i32, i32) {
    %c0_i32 = arith.constant 0 : i32
    %c0_i32_0 = arith.constant 0 : i32
    %c0_i32_1 = arith.constant 0 : i32
    return %c0_i32, %c0_i32_0 : i32, i32
  }
  func.func @transform_10(%arg0: i32) -> (i32, i32) {
    %c0_i32 = arith.constant 0 : i32
    %c0_i32_0 = arith.constant 0 : i32
    %c0_i32_1 = arith.constant 0 : i32
    return %c0_i32, %c0_i32_0 : i32, i32
  }
  func.func @transform_11(%arg0: i32) -> (i32, i32) {
    %c0_i32 = arith.constant 0 : i32
    %c0_i32_0 = arith.constant 0 : i32
    return %arg0, %c0_i32 : i32, i32
  }
}

</mosaic_0001>

<llo_original>
// kernel: tpu_custom_call.1
$region0: #{tpu_custom_call.1}
  #allocation0 [shape = 'u32[]', space=smem, size = 0x4, offset = 0x4, fixed_abs, tag = 'smem constant byte address 0x4 - core index']
  #allocation1 [shape = 'u32[72,128]{1,0:T(1,128)}', space=vmem, size = 0x9000, scoped, tag = 'internal scratch']
  %s0 = inlined_call_operand.hbm [shape: bf16[16,32], index: 0, kind: input, shape index: {}]
  %s1 = inlined_call_operand.hbm [shape: bf16[16,32], index: 1, kind: input, shape index: {}]
  %s2 = inlined_call_operand.hbm [shape: bf16[16,32], index: 2, kind: input, shape index: {}]
  %s3 = inlined_call_operand.hbm [shape: bf16[32,32], index: 3, kind: input, shape index: {}]
  %s4 = inlined_call_operand.hbm [shape: bf16[32,32], index: 4, kind: input, shape index: {}]
  %s5 = inlined_call_operand.hbm [shape: bf16[32,32], index: 5, kind: input, shape index: {}]
  %s6 = inlined_call_operand.hbm [shape: bf16[32,32], index: 6, kind: input, shape index: {}]
  %s7 = inlined_call_operand.vmem [shape: f32[1,32], index: 7, kind: input, shape index: {}]
  %s8 = inlined_call_operand.vmem [shape: f32[1,32], index: 8, kind: input, shape index: {}]
  %s9 = inlined_call_operand.vmem [shape: f32[1,32], index: 9, kind: input, shape index: {}]
  %s10 = inlined_call_operand.vmem [shape: f32[1,32], index: 10, kind: input, shape index: {}]
  %s11 = inlined_call_operand.hbm [shape: f32[16,32], index: 11, kind: output, shape index: {}]
  %s12 = sld [smem:[#allocation0]]
  $region82: #{tpu_custom_call.1} parent=0
    _
  %s14 = ssub.s32 1, %s12
  %s15 = scalar_select 0, %s14, %s12
  $region1: #{tpu_custom_call.1} parent=0
    #allocation2 [shape = 'u8[4096]{0}', space=vmem, size = 0x1000, scoped, tag = 'input window, operand 0, single buffered']
    #allocation3 [shape = 's32[1]{0}', space=sflag, size = 0x4, scoped, tag = 'scoped memory for tpu_custom_call.1']
    #allocation4 [shape = 's32[1]{0}', space=sflag, size = 0x4, scoped, tag = 'scoped memory for tpu_custom_call.1']
    #allocation5 [shape = 'u8[4096]{0}', space=vmem, size = 0x1000, scoped, tag = 'input window, operand 1, single buffered']
    #allocation6 [shape = 's32[1]{0}', space=sflag, size = 0x4, scoped, tag = 'scoped memory for tpu_custom_call.1']
    #allocation7 [shape = 'u8[4096]{0}', space=vmem, size = 0x1000, scoped, tag = 'input window, operand 2, single buffered']
    #allocation8 [shape = 'u8[8192]{0}', space=vmem, size = 0x2000, scoped, tag = 'input window, operand 3, single buffered']
    #allocation9 [shape = 's32[1]{0}', space=sflag, size = 0x4, scoped, tag = 'scoped memory for tpu_custom_call.1']
    #allocation10 [shape = 'u8[8192]{0}', space=vmem, size = 0x2000, scoped, tag = 'input window, operand 4, single buffered']
    #allocation11 [shape = 'u8[8192]{0}', space=vmem, size = 0x2000, scoped, tag = 'input window, operand 5, single buffered']
    #allocation12 [shape = 's32[1]{0}', space=sflag, size = 0x4, scoped, tag = 'scoped memory for tpu_custom_call.1']
    #allocation13 [shape = 'u8[8192]{0}', space=vmem, size = 0x2000, scoped, tag = 'input window, operand 6, single buffered']
    #allocation14 [shape = 'u8[8192]{0}', space=vmem, size = 0x2000, scoped, tag = 'output window, operand 0, single buffered']
    %16 = vsyncpa [#allocation3], 0
    %17 = vsyncpa [#allocation6], 0
    %18 = vsyncpa [#allocation9], 0
    %19 = vsyncpa [#allocation12], 0
    %20 = vsyncpa [#allocation4], 0
    // Predicated region
    $region2: #{tpu_custom_call.1} parent=1 // pred_check
      _
    $region3: #{tpu_custom_call.1} parent=1 // pred_check_branch
      %22 = sbr.rel (0) target = $region5
    $region4: #{tpu_custom_call.1} parent=1 // pred_region
      %24 = vsyncadd [#allocation3], 0
      %s25 = sshll.u32 %s0, 4
      %s26 = int_to_ptr.hbm [resolvable:$true] %s25
      %s27 = sshll.u32 [#allocation2], 4
      %s28 = int_to_ptr.vmem [resolvable:$true] %s27
      %33 = dma.hbm_to_vmem [thread:$0]  %s26, 128, %s28, [#allocation3], 64, 64, 4
    $region5: #{tpu_custom_call.1} parent=1 // pred_fallthru
      _
    // Predicated region
    $region6: #{tpu_custom_call.1} parent=1 // pred_check
      _
    $region7: #{tpu_custom_call.1} parent=1 // pred_check_branch
      %35 = sbr.rel (0) target = $region9
    $region8: #{tpu_custom_call.1} parent=1 // pred_region
      %37 = vsyncadd [#allocation6], 0
      %s38 = sshll.u32 %s1, 4
      %s39 = int_to_ptr.hbm [resolvable:$true] %s38
      %s40 = sshll.u32 [#allocation5], 4
      %s41 = int_to_ptr.vmem [resolvable:$true] %s40
      %46 = dma.hbm_to_vmem [thread:$0]  %s39, 128, %s41, [#allocation6], 64, 64, 4
    $region9: #{tpu_custom_call.1} parent=1 // pred_fallthru
      _
    // Predicated region
    $region10: #{tpu_custom_call.1} parent=1 // pred_check
      _
    $region11: #{tpu_custom_call.1} parent=1 // pred_check_branch
      %48 = sbr.rel (0) target = $region13
    $region12: #{tpu_custom_call.1} parent=1 // pred_region
      %50 = vsyncadd [#allocation6], 0
      %s51 = sshll.u32 %s2, 4
      %s52 = int_to_ptr.hbm [resolvable:$true] %s51
      %s53 = sshll.u32 [#allocation7], 4
      %s54 = int_to_ptr.vmem [resolvable:$true] %s53
      %59 = dma.hbm_to_vmem [thread:$0]  %s52, 128, %s54, [#allocation6], 64, 64, 4
    $region13: #{tpu_custom_call.1} parent=1 // pred_fallthru
      _
    // Predicated region
    $region14: #{tpu_custom_call.1} parent=1 // pred_check
      _
    $region15: #{tpu_custom_call.1} parent=1 // pred_check_branch
      %61 = sbr.rel (0) target = $region17
    $region16: #{tpu_custom_call.1} parent=1 // pred_region
      %63 = vsyncadd [#allocation9], 0
      %s64 = sshll.u32 %s3, 4
      %s65 = int_to_ptr.hbm [resolvable:$true] %s64
      %s66 = sshll.u32 [#allocation8], 4
      %s67 = int_to_ptr.vmem [resolvable:$true] %s66
      %72 = dma.hbm_to_vmem [thread:$0]  %s65, 256, %s67, [#allocation9], 64, 64, 4
    $region17: #{tpu_custom_call.1} parent=1 // pred_fallthru
      _
    // Predicated region
    $region18: #{tpu_custom_call.1} parent=1 // pred_check
      _
    $region19: #{tpu_custom_call.1} parent=1 // pred_check_branch
      %74 = sbr.rel (0) target = $region21
    $region20: #{tpu_custom_call.1} parent=1 // pred_region
      %76 = vsyncadd [#allocation9], 0
      %s77 = sshll.u32 %s4, 4
      %s78 = int_to_ptr.hbm [resolvable:$true] %s77
      %s79 = sshll.u32 [#allocation10], 4
      %s80 = int_to_ptr.vmem [resolvable:$true] %s79
      %85 = dma.hbm_to_vmem [thread:$0]  %s78, 256, %s80, [#allocation9], 64, 64, 4
    $region21: #{tpu_custom_call.1} parent=1 // pred_fallthru
      _
    // Predicated region
    $region22: #{tpu_custom_call.1} parent=1 // pred_check
      _
    $region23: #{tpu_custom_call.1} parent=1 // pred_check_branch
      %87 = sbr.rel (0) target = $region25
    $region24: #{tpu_custom_call.1} parent=1 // pred_region
      %89 = vsyncadd [#allocation12], 0
      %s90 = sshll.u32 %s5, 4
      %s91 = int_to_ptr.hbm [resolvable:$true] %s90
      %s92 = sshll.u32 [#allocation11], 4
      %s93 = int_to_ptr.vmem [resolvable:$true] %s92
      %98 = dma.hbm_to_vmem [thread:$0]  %s91, 256, %s93, [#allocation12], 64, 64, 4
    $region25: #{tpu_custom_call.1} parent=1 // pred_fallthru
      _
    // Predicated region
    $region26: #{tpu_custom_call.1} parent=1 // pred_check
      _
    $region27: #{tpu_custom_call.1} parent=1 // pred_check_branch
      %100 = sbr.rel (0) target = $region29
    $region28: #{tpu_custom_call.1} parent=1 // pred_region
      %102 = vsyncadd [#allocation12], 0
      %s103 = sshll.u32 %s6, 4
      %s104 = int_to_ptr.hbm [resolvable:$true] %s103
      %s105 = sshll.u32 [#allocation13], 4
      %s106 = int_to_ptr.vmem [resolvable:$true] %s105
      %111 = dma.hbm_to_vmem [thread:$0]  %s104, 256, %s106, [#allocation12], 64, 64, 4
    $region29: #{tpu_custom_call.1} parent=1 // pred_fallthru
      _
    // Predicated region
    $region30: #{tpu_custom_call.1} parent=1 // pred_check
      _
    $region31: #{tpu_custom_call.1} parent=1 // pred_check_branch
      %113 = sbr.rel (0) target = $region33
    $region32: #{tpu_custom_call.1} parent=1 // pred_region
      _
    $region33: #{tpu_custom_call.1} parent=1 // pred_fallthru
      _
    // Predicated region
    $region34: #{tpu_custom_call.1} parent=1 // pred_check
      _
    $region35: #{tpu_custom_call.1} parent=1 // pred_check_branch
      %115 = sbr.rel (0) target = $region37
    $region36: #{tpu_custom_call.1} parent=1 // pred_region
      _
    $region37: #{tpu_custom_call.1} parent=1 // pred_fallthru
      _
    // Predicated region
    $region38: #{tpu_custom_call.1} parent=1 // pred_check
      _
    $region39: #{tpu_custom_call.1} parent=1 // pred_check_branch
      %117 = sbr.rel (0) target = $region41
    $region40: #{tpu_custom_call.1} parent=1 // pred_region
      _
    $region41: #{tpu_custom_call.1} parent=1 // pred_fallthru
      _
    // Predicated region
    $region42: #{tpu_custom_call.1} parent=1 // pred_check
      _
    $region43: #{tpu_custom_call.1} parent=1 // pred_check_branch
      %119 = sbr.rel (0) target = $region45
    $region44: #{tpu_custom_call.1} parent=1 // pred_region
      _
    $region45: #{tpu_custom_call.1} parent=1 // pred_fallthru
      _
    // Predicated region
    $region46: #{tpu_custom_call.1} parent=1 // pred_check
      _
    $region47: #{tpu_custom_call.1} parent=1 // pred_check_branch
      %121 = sbr.rel (0) target = $region49
    $region48: #{tpu_custom_call.1} parent=1 // pred_region
      %123 = dma.done [#allocation3], 128
    $region49: #{tpu_custom_call.1} parent=1 // pred_fallthru
      _
    // Predicated region
    $region50: #{tpu_custom_call.1} parent=1 // pred_check
      _
    $region51: #{tpu_custom_call.1} parent=1 // pred_check_branch
      %125 = sbr.rel (0) target = $region53
    $region52: #{tpu_custom_call.1} parent=1 // pred_region
      %127 = dma.done [#allocation6], 128
    $region53: #{tpu_custom_call.1} parent=1 // pred_fallthru
      _
    // Predicated region
    $region54: #{tpu_custom_call.1} parent=1 // pred_check
      _
    $region55: #{tpu_custom_call.1} parent=1 // pred_check_branch
      %129 = sbr.rel (0) target = $region57
    $region56: #{tpu_custom_call.1} parent=1 // pred_region
      %131 = dma.done [#allocation6], 128
    $region57: #{tpu_custom_call.1} parent=1 // pred_fallthru
      _
    // Predicated region
    $region58: #{tpu_custom_call.1} parent=1 // pred_check
      _
    $region59: #{tpu_custom_call.1} parent=1 // pred_check_branch
      %133 = sbr.rel (0) target = $region61
    $region60: #{tpu_custom_call.1} parent=1 // pred_region
      %135 = dma.done [#allocation9], 256
    $region61: #{tpu_custom_call.1} parent=1 // pred_fallthru
      _
    // Predicated region
    $region62: #{tpu_custom_call.1} parent=1 // pred_check
      _
    $region63: #{tpu_custom_call.1} parent=1 // pred_check_branch
      %137 = sbr.rel (0) target = $region65
    $region64: #{tpu_custom_call.1} parent=1 // pred_region
      %139 = dma.done [#allocation9], 256
    $region65: #{tpu_custom_call.1} parent=1 // pred_fallthru
      _
    // Predicated region
    $region66: #{tpu_custom_call.1} parent=1 // pred_check
      _
    $region67: #{tpu_custom_call.1} parent=1 // pred_check_branch
      %141 = sbr.rel (0) target = $region69
    $region68: #{tpu_custom_call.1} parent=1 // pred_region
      %143 = dma.done [#allocation12], 256
    $region69: #{tpu_custom_call.1} parent=1 // pred_fallthru
      _
    // Predicated region
    $region70: #{tpu_custom_call.1} parent=1 // pred_check
      _
    $region71: #{tpu_custom_call.1} parent=1 // pred_check_branch
      %145 = sbr.rel (0) target = $region73
    $region72: #{tpu_custom_call.1} parent=1 // pred_region
      %147 = dma.done [#allocation12], 256
    $region73: #{tpu_custom_call.1} parent=1 // pred_fallthru
      _
    %v149 = vld [vmem:[#allocation2] sm:$0xf]
    %v150 = vld [vmem:[#allocation2 + $0x4] sm:$0xf]
    %v151 = vld [vmem:[#allocation8] sm:$0xf]
    %v152 = vld [vmem:[#allocation8 + $0x4] sm:$0xf]
    %v153 = vld [vmem:[#allocation8 + $0x8] sm:$0xf]
    %v154 = vld [vmem:[#allocation8 + $0xc] sm:$0xf]
    %v155 = vld [vmem:[%s7] sm:$0x1]
    %v157 = vperm.slane %v155, 0
    %v161 = vunpack.c.l.b16 %v149
    %v162 = vunpack.c.l.b16 %v150
    %v163 = vpack.c.b16 %v162, %v161
    %v168 = vunpack.c.l.b16 %v151
    %v169 = vunpack.c.l.b16 %v152
    %v170 = vunpack.c.l.b16 %v153
    %v171 = vunpack.c.l.b16 %v154
    %v172 = vpack.c.b16 %v169, %v168
    %v173 = vpack.c.b16 %v171, %v170
    %vm176 = vcmask 261120
    %v178 = vsel %vm176, %v163, 0
    %180 = vmatpush.bf16.msra.mxu0 0
    %181 = vmatpush.bf16.msra.mxu0 0
    %182 = vmatpush.bf16.msra.mxu0 0
    %183 = vmatpush.bf16.msra.mxu0 0
    %184 = vmatpush.bf16.msra.mxu0 0
    %185 = vmatpush.bf16.msra.mxu0 0
    %186 = vmatpush.bf16.msra.mxu0 %v173
    %187 = vmatpush.bf16.msra.mxu0 %v172
    %188 = vmatmul.bf16.gmra.mxu0 %v178
    %v189 = vpop.f32.mrf.mxu0
    %v190 = vadd.f32 %v157, %v189
    %v191 = vpop.f32.mrf.mxu0
    %v192 = vadd.f32 %v157, %v191
    %193 = vdwg.mxu0
    %v194 = vld [vmem:[#allocation5] sm:$0xf]
    %v195 = vld [vmem:[#allocation5 + $0x4] sm:$0xf]
    %v196 = vld [vmem:[#allocation10] sm:$0xf]
    %v197 = vld [vmem:[#allocation10 + $0x4] sm:$0xf]
    %v198 = vld [vmem:[#allocation10 + $0x8] sm:$0xf]
    %v199 = vld [vmem:[#allocation10 + $0xc] sm:$0xf]
    %v200 = vld [vmem:[%s8] sm:$0x1]
    %v202 = vperm.slane %v200, 0
    %v206 = vunpack.c.l.b16 %v194
    %v207 = vunpack.c.l.b16 %v195
    %v208 = vpack.c.b16 %v207, %v206
    %v213 = vunpack.c.l.b16 %v196
    %v214 = vunpack.c.l.b16 %v197
    %v215 = vunpack.c.l.b16 %v198
    %v216 = vunpack.c.l.b16 %v199
    %v217 = vpack.c.b16 %v214, %v213
    %v218 = vpack.c.b16 %v216, %v215
    %v222 = vsel %vm176, %v208, 0
    %224 = vmatpush.bf16.msra.mxu0 0
    %225 = vmatpush.bf16.msra.mxu0 0
    %226 = vmatpush.bf16.msra.mxu0 0
    %227 = vmatpush.bf16.msra.mxu0 0
    %228 = vmatpush.bf16.msra.mxu0 0
    %229 = vmatpush.bf16.msra.mxu0 0
    %230 = vmatpush.bf16.msra.mxu0 %v218
    %231 = vmatpush.bf16.msra.mxu0 %v217
    %232 = vmatmul.bf16.gmra.mxu0 %v222
    %v233 = vpop.f32.mrf.mxu0
    %v234 = vadd.f32 %v202, %v233
    %v235 = vpop.f32.mrf.mxu0
    %v236 = vadd.f32 %v202, %v235
    %237 = vdwg.mxu0
    %v238 = vld [vmem:[#allocation7] sm:$0xf]
    %v239 = vld [vmem:[#allocation7 + $0x4] sm:$0xf]
    %v240 = vld [vmem:[#allocation11] sm:$0xf]
    %v241 = vld [vmem:[#allocation11 + $0x4] sm:$0xf]
    %v242 = vld [vmem:[#allocation11 + $0x8] sm:$0xf]
    %v243 = vld [vmem:[#allocation11 + $0xc] sm:$0xf]
    %v244 = vld [vmem:[%s9] sm:$0x1]
    %v246 = vperm.slane %v244, 0
    %v250 = vunpack.c.l.b16 %v238
    %v251 = vunpack.c.l.b16 %v239
    %v252 = vpack.c.b16 %v251, %v250
    %v257 = vunpack.c.l.b16 %v240
    %v258 = vunpack.c.l.b16 %v241
    %v259 = vunpack.c.l.b16 %v242
    %v260 = vunpack.c.l.b16 %v243
    %v261 = vpack.c.b16 %v258, %v257
    %v262 = vpack.c.b16 %v260, %v259
    %v266 = vsel %vm176, %v252, 0
    %268 = vmatpush.bf16.msra.mxu0 0
    %269 = vmatpush.bf16.msra.mxu0 0
    %270 = vmatpush.bf16.msra.mxu0 0
    %271 = vmatpush.bf16.msra.mxu0 0
    %272 = vmatpush.bf16.msra.mxu0 0
    %273 = vmatpush.bf16.msra.mxu0 0
    %274 = vmatpush.bf16.msra.mxu0 %v262
    %275 = vmatpush.bf16.msra.mxu0 %v261
    %276 = vmatmul.bf16.gmra.mxu0 %v266
    %v277 = vpop.f32.mrf.mxu0
    %v278 = vadd.f32 %v246, %v277
    %v279 = vpop.f32.mrf.mxu0
    %v280 = vadd.f32 %v246, %v279
    %281 = vdwg.mxu0
    %v282 = vpack.c.bf16 %v190, %v190
    %v283 = vpack.c.bf16 %v192, %v192
    %v284 = vpack.c.bf16 %v234, %v234
    %v285 = vpack.c.bf16 %v236, %v236
    %v286 = vpack.c.bf16 %v278, %v278
    %v287 = vpack.c.bf16 %v280, %v280
    %vm288 = vcmask 64512
    %v290 = vsel %vm288, %v282, 0
    %v293 = vsel %vm288, %v284, 0
    %295 = vmatpush.bf16.xpose.msra.mxu0 0
    %296 = vmatpush.bf16.xpose.msra.mxu0 0
    %297 = vmatpush.bf16.xpose.msra.mxu0 0
    %298 = vmatpush.bf16.xpose.msra.mxu0 0
    %299 = vmatpush.bf16.xpose.msra.mxu0 0
    %300 = vmatpush.bf16.xpose.msra.mxu0 0
    %301 = vmatpush.bf16.xpose.msra.mxu0 0
    %302 = vmatpush.bf16.xpose.msra.mxu0 %v293
    %303 = vmatmul.bf16.gmra.mxu0 %v290
    %v304 = vpop.f32.mrf.mxu0
    %v305 = vadd.f32 0.0, %v304
    %v306 = vpop.f32.mrf.mxu0
    %307 = vdwg.mxu0
    %v308 = vsel %vm288, %v305, -inf
    %309 = vmax.xlane.f32.xlu0 %v308
    %v310 = vpop.xlane.xlu0 %309
    %v311 = vsub.f32 %v305, %v310
    %v312 = vmul.f32 %v311, 1.442695
    %v313 = vpow.pop %v312
    %v314 = vsel %vm288, %v313, 0.0
    %315 = vadd.xlane.f32.xlu0 %v314
    %v316 = vpop.xlane.xlu0 %315
    %v317 = vrcp.pop %v316
    %v318 = vmul.f32 %v313, %v317
    %v319 = vpack.c.bf16 %v318, %v318
    %v321 = vsel %vm288, %v319, 0
    %vm323 = vcmask 1043456
    %v325 = vsel %vm323, %v286, 0
    %327 = vmatpush.bf16.msra.mxu0 0
    %328 = vmatpush.bf16.msra.mxu0 0
    %329 = vmatpush.bf16.msra.mxu0 0
    %330 = vmatpush.bf16.msra.mxu0 0
    %331 = vmatpush.bf16.msra.mxu0 0
    %332 = vmatpush.bf16.msra.mxu0 0
    %333 = vmatpush.bf16.msra.mxu0 0
    %334 = vmatpush.bf16.msra.mxu0 %v325
    %335 = vmatmul.bf16.gmra.mxu0 %v321
    %v336 = vpop.f32.mrf.mxu0
    %v337 = vadd.f32 0.0, %v336
    %v338 = vpop.f32.mrf.mxu0
    %339 = vdwg.mxu0
    %v340 = vpack.c.bf16 %v337, %v337
    %v341 = vld [vmem:[#allocation13] sm:$0xf]
    %v343 = vunpack.c.l.b16 %v282
    %v344 = vpack.c.b16 %v343, %v343
    %345 = vrot.lane.b32.xlu0 %v344, 120
    %v346 = vpop.permute.xlu0 %345
    %v348 = vunpack.c.l.b16 %v284
    %v349 = vpack.c.b16 %v348, %v348
    %350 = vrot.lane.b32.xlu0 %v349, 120
    %v351 = vpop.permute.xlu0 %350
    %v353 = vsel %vm288, %v346, 0
    %v356 = vsel %vm288, %v351, 0
    %358 = vmatpush.bf16.xpose.msra.mxu0 0
    %359 = vmatpush.bf16.xpose.msra.mxu0 0
    %360 = vmatpush.bf16.xpose.msra.mxu0 0
    %361 = vmatpush.bf16.xpose.msra.mxu0 0
    %362 = vmatpush.bf16.xpose.msra.mxu0 0
    %363 = vmatpush.bf16.xpose.msra.mxu0 0
    %364 = vmatpush.bf16.xpose.msra.mxu0 0
    %365 = vmatpush.bf16.xpose.msra.mxu0 %v356
    %366 = vmatmul.bf16.gmra.mxu0 %v353
    %v367 = vpop.f32.mrf.mxu0
    %v368 = vadd.f32 0.0, %v367
    %v369 = vpop.f32.mrf.mxu0
    %370 = vdwg.mxu0
    %v371 = vsel %vm288, %v368, -inf
    %372 = vmax.xlane.f32.xlu0 %v371
    %v373 = vpop.xlane.xlu0 %372
    %v374 = vsub.f32 %v368, %v373
    %v375 = vmul.f32 %v374, 1.442695
    %v376 = vpow.pop %v375
    %v377 = vsel %vm288, %v376, 0.0
    %378 = vadd.xlane.f32.xlu0 %v377
    %v379 = vpop.xlane.xlu0 %378
    %v380 = vrcp.pop %v379
    %v381 = vmul.f32 %v376, %v380
    %v382 = vpack.c.bf16 %v381, %v381
    %v384 = vunpack.c.l.b16 %v286
    %v385 = vpack.c.b16 %v384, %v384
    %386 = vrot.lane.b32.xlu0 %v385, 120
    %v387 = vpop.permute.xlu0 %386
    %v389 = vsel %vm288, %v382, 0
    %v392 = vsel %vm323, %v387, 0
    %394 = vmatpush.bf16.msra.mxu0 0
    %395 = vmatpush.bf16.msra.mxu0 0
    %396 = vmatpush.bf16.msra.mxu0 0
    %397 = vmatpush.bf16.msra.mxu0 0
    %398 = vmatpush.bf16.msra.mxu0 0
    %399 = vmatpush.bf16.msra.mxu0 0
    %400 = vmatpush.bf16.msra.mxu0 0
    %401 = vmatpush.bf16.msra.mxu0 %v392
    %402 = vmatmul.bf16.gmra.mxu0 %v389
    %v403 = vpop.f32.mrf.mxu0
    %v404 = vadd.f32 0.0, %v403
    %v405 = vpop.f32.mrf.mxu0
    %406 = vdwg.mxu0
    %v407 = vpack.c.bf16 %v404, %v404
    %v408 = vld [vmem:[#allocation13 + $0x4] sm:$0xf]
    %v410 = vsel %vm288, %v407, 0
    %v413 = vsel %vm323, %v408, 0
    %415 = vmatpush.bf16.msra.mxu0 0
    %416 = vmatpush.bf16.msra.mxu0 0
    %417 = vmatpush.bf16.msra.mxu0 0
    %418 = vmatpush.bf16.msra.mxu0 0
    %419 = vmatpush.bf16.msra.mxu0 0
    %420 = vmatpush.bf16.msra.mxu0 0
    %421 = vmatpush.bf16.msra.mxu0 0
    %422 = vmatpush.bf16.msra.mxu0 %v413
    %423 = vmatmul.bf16.gmra.mxu0 %v410
    %v424 = vpop.f32.mrf.mxu0
    %v425 = vadd.f32 0.0, %v424
    %v426 = vpop.f32.mrf.mxu0
    %427 = vdwg.mxu0
    %v429 = vsel %vm288, %v340, 0
    %v432 = vsel %vm323, %v341, 0
    %434 = vmatpush.bf16.msra.mxu0 0
    %435 = vmatpush.bf16.msra.mxu0 0
    %436 = vmatpush.bf16.msra.mxu0 0
    %437 = vmatpush.bf16.msra.mxu0 0
    %438 = vmatpush.bf16.msra.mxu0 0
    %439 = vmatpush.bf16.msra.mxu0 0
    %440 = vmatpush.bf16.msra.mxu0 0
    %441 = vmatpush.bf16.msra.mxu0 %v432
    %442 = vmatmul.bf16.gmra.mxu0 %v429
    %v443 = vpop.f32.mrf.mxu0
    %v444 = vadd.f32 %v425, %v443
    %v445 = vpop.f32.mrf.mxu0
    %446 = vdwg.mxu0
    %447 = vrot.lane.b32.xlu0 %v344, 112
    %v448 = vpop.permute.xlu0 %447
    %449 = vrot.lane.b32.xlu0 %v349, 112
    %v450 = vpop.permute.xlu0 %449
    %v452 = vsel %vm288, %v448, 0
    %v455 = vsel %vm288, %v450, 0
    %457 = vmatpush.bf16.xpose.msra.mxu0 0
    %458 = vmatpush.bf16.xpose.msra.mxu0 0
    %459 = vmatpush.bf16.xpose.msra.mxu0 0
    %460 = vmatpush.bf16.xpose.msra.mxu0 0
    %461 = vmatpush.bf16.xpose.msra.mxu0 0
    %462 = vmatpush.bf16.xpose.msra.mxu0 0
    %463 = vmatpush.bf16.xpose.msra.mxu0 0
    %464 = vmatpush.bf16.xpose.msra.mxu0 %v455
    %465 = vmatmul.bf16.gmra.mxu0 %v452
    %v466 = vpop.f32.mrf.mxu0
    %v467 = vadd.f32 0.0, %v466
    %v468 = vpop.f32.mrf.mxu0
    %469 = vdwg.mxu0
    %v470 = vsel %vm288, %v467, -inf
    %471 = vmax.xlane.f32.xlu0 %v470
    %v472 = vpop.xlane.xlu0 %471
    %v473 = vsub.f32 %v467, %v472
    %v474 = vmul.f32 %v473, 1.442695
    %v475 = vpow.pop %v474
    %v476 = vsel %vm288, %v475, 0.0
    %477 = vadd.xlane.f32.xlu0 %v476
    %v478 = vpop.xlane.xlu0 %477
    %v479 = vrcp.pop %v478
    %v480 = vmul.f32 %v475, %v479
    %v481 = vpack.c.bf16 %v480, %v480
    %482 = vrot.lane.b32.xlu0 %v385, 112
    %v483 = vpop.permute.xlu0 %482
    %v485 = vsel %vm288, %v481, 0
    %v488 = vsel %vm323, %v483, 0
    %490 = vmatpush.bf16.msra.mxu0 0
    %491 = vmatpush.bf16.msra.mxu0 0
    %492 = vmatpush.bf16.msra.mxu0 0
    %493 = vmatpush.bf16.msra.mxu0 0
    %494 = vmatpush.bf16.msra.mxu0 0
    %495 = vmatpush.bf16.msra.mxu0 0
    %496 = vmatpush.bf16.msra.mxu0 0
    %497 = vmatpush.bf16.msra.mxu0 %v488
    %498 = vmatmul.bf16.gmra.mxu0 %v485
    %v499 = vpop.f32.mrf.mxu0
    %v500 = vadd.f32 0.0, %v499
    %v501 = vpop.f32.mrf.mxu0
    %502 = vdwg.mxu0
    %v503 = vpack.c.bf16 %v500, %v500
    %v504 = vld [vmem:[#allocation13 + $0x8] sm:$0xf]
    %v506 = vsel %vm288, %v503, 0
    %v509 = vsel %vm323, %v504, 0
    %511 = vmatpush.bf16.msra.mxu0 0
    %512 = vmatpush.bf16.msra.mxu0 0
    %513 = vmatpush.bf16.msra.mxu0 0
    %514 = vmatpush.bf16.msra.mxu0 0
    %515 = vmatpush.bf16.msra.mxu0 0
    %516 = vmatpush.bf16.msra.mxu0 0
    %517 = vmatpush.bf16.msra.mxu0 0
    %518 = vmatpush.bf16.msra.mxu0 %v509
    %519 = vmatmul.bf16.gmra.mxu0 %v506
    %v520 = vpop.f32.mrf.mxu0
    %v521 = vadd.f32 0.0, %v520
    %v522 = vpop.f32.mrf.mxu0
    %523 = vdwg.mxu0
    %v524 = vadd.f32 %v444, %v521
    %525 = vrot.lane.b32.xlu0 %v344, 104
    %v526 = vpop.permute.xlu0 %525
    %527 = vrot.lane.b32.xlu0 %v349, 104
    %v528 = vpop.permute.xlu0 %527
    %v530 = vsel %vm288, %v526, 0
    %v533 = vsel %vm288, %v528, 0
    %535 = vmatpush.bf16.xpose.msra.mxu0 0
    %536 = vmatpush.bf16.xpose.msra.mxu0 0
    %537 = vmatpush.bf16.xpose.msra.mxu0 0
    %538 = vmatpush.bf16.xpose.msra.mxu0 0
    %539 = vmatpush.bf16.xpose.msra.mxu0 0
    %540 = vmatpush.bf16.xpose.msra.mxu0 0
    %541 = vmatpush.bf16.xpose.msra.mxu0 0
    %542 = vmatpush.bf16.xpose.msra.mxu0 %v533
    %543 = vmatmul.bf16.gmra.mxu0 %v530
    %v544 = vpop.f32.mrf.mxu0
    %v545 = vadd.f32 0.0, %v544
    %v546 = vpop.f32.mrf.mxu0
    %547 = vdwg.mxu0
    %v548 = vsel %vm288, %v545, -inf
    %549 = vmax.xlane.f32.xlu0 %v548
    %v550 = vpop.xlane.xlu0 %549
    %v551 = vsub.f32 %v545, %v550
    %v552 = vmul.f32 %v551, 1.442695
    %v553 = vpow.pop %v552
    %v554 = vsel %vm288, %v553, 0.0
    %555 = vadd.xlane.f32.xlu0 %v554
    %v556 = vpop.xlane.xlu0 %555
    %v557 = vrcp.pop %v556
    %v558 = vmul.f32 %v553, %v557
    %v559 = vpack.c.bf16 %v558, %v558
    %560 = vrot.lane.b32.xlu0 %v385, 104
    %v561 = vpop.permute.xlu0 %560
    %v563 = vsel %vm288, %v559, 0
    %v566 = vsel %vm323, %v561, 0
    %568 = vmatpush.bf16.msra.mxu0 0
    %569 = vmatpush.bf16.msra.mxu0 0
    %570 = vmatpush.bf16.msra.mxu0 0
    %571 = vmatpush.bf16.msra.mxu0 0
    %572 = vmatpush.bf16.msra.mxu0 0
    %573 = vmatpush.bf16.msra.mxu0 0
    %574 = vmatpush.bf16.msra.mxu0 0
    %575 = vmatpush.bf16.msra.mxu0 %v566
    %576 = vmatmul.bf16.gmra.mxu0 %v563
    %v577 = vpop.f32.mrf.mxu0
    %v578 = vadd.f32 0.0, %v577
    %v579 = vpop.f32.mrf.mxu0
    %580 = vdwg.mxu0
    %v581 = vpack.c.bf16 %v578, %v578
    %v582 = vld [vmem:[#allocation13 + $0xc] sm:$0xf]
    %v584 = vsel %vm288, %v581, 0
    %v587 = vsel %vm323, %v582, 0
    %589 = vmatpush.bf16.msra.mxu0 0
    %590 = vmatpush.bf16.msra.mxu0 0
    %591 = vmatpush.bf16.msra.mxu0 0
    %592 = vmatpush.bf16.msra.mxu0 0
    %593 = vmatpush.bf16.msra.mxu0 0
    %594 = vmatpush.bf16.msra.mxu0 0
    %595 = vmatpush.bf16.msra.mxu0 0
    %596 = vmatpush.bf16.msra.mxu0 %v587
    %597 = vmatmul.bf16.gmra.mxu0 %v584
    %v598 = vpop.f32.mrf.mxu0
    %v599 = vadd.f32 0.0, %v598
    %v600 = vpop.f32.mrf.mxu0
    %601 = vdwg.mxu0
    %v602 = vadd.f32 %v524, %v599
    %v603 = vld [vmem:[%s10] sm:$0x1]
    %v605 = vperm.slane %v603, 0
    %v607 = vadd.f32 %v602, %v605
    %608 = vst.msk [vmem:[#allocation14] sm:$0xff] %vm176, %v607
    %v610 = vsel %vm288, %v283, 0
    %v613 = vsel %vm288, %v285, 0
    %615 = vmatpush.bf16.xpose.msra.mxu0 0
    %616 = vmatpush.bf16.xpose.msra.mxu0 0
    %617 = vmatpush.bf16.xpose.msra.mxu0 0
    %618 = vmatpush.bf16.xpose.msra.mxu0 0
    %619 = vmatpush.bf16.xpose.msra.mxu0 0
    %620 = vmatpush.bf16.xpose.msra.mxu0 0
    %621 = vmatpush.bf16.xpose.msra.mxu0 0
    %622 = vmatpush.bf16.xpose.msra.mxu0 %v613
    %623 = vmatmul.bf16.gmra.mxu0 %v610
    %v624 = vpop.f32.mrf.mxu0
    %v625 = vadd.f32 0.0, %v624
    %v626 = vpop.f32.mrf.mxu0
    %627 = vdwg.mxu0
    %v628 = vsel %vm288, %v625, -inf
    %629 = vmax.xlane.f32.xlu0 %v628
    %v630 = vpop.xlane.xlu0 %629
    %v631 = vsub.f32 %v625, %v630
    %v632 = vmul.f32 %v631, 1.442695
    %v633 = vpow.pop %v632
    %v634 = vsel %vm288, %v633, 0.0
    %635 = vadd.xlane.f32.xlu0 %v634
    %v636 = vpop.xlane.xlu0 %635
    %v637 = vrcp.pop %v636
    %v638 = vmul.f32 %v633, %v637
    %v639 = vpack.c.bf16 %v638, %v638
    %v641 = vsel %vm288, %v639, 0
    %v644 = vsel %vm323, %v287, 0
    %646 = vmatpush.bf16.msra.mxu0 0
    %647 = vmatpush.bf16.msra.mxu0 0
    %648 = vmatpush.bf16.msra.mxu0 0
    %649 = vmatpush.bf16.msra.mxu0 0
    %650 = vmatpush.bf16.msra.mxu0 0
    %651 = vmatpush.bf16.msra.mxu0 0
    %652 = vmatpush.bf16.msra.mxu0 0
    %653 = vmatpush.bf16.msra.mxu0 %v644
    %654 = vmatmul.bf16.gmra.mxu0 %v641
    %v655 = vpop.f32.mrf.mxu0
    %v656 = vadd.f32 0.0, %v655
    %v657 = vpop.f32.mrf.mxu0
    %658 = vdwg.mxu0
    %v659 = vpack.c.bf16 %v656, %v656
    %v660 = vld [vmem:[#allocation13] sm:$0xf]
    %v662 = vunpack.c.l.b16 %v283
    %v663 = vpack.c.b16 %v662, %v662
    %664 = vrot.lane.b32.xlu0 %v663, 120
    %v665 = vpop.permute.xlu0 %664
    %v667 = vunpack.c.l.b16 %v285
    %v668 = vpack.c.b16 %v667, %v667
    %669 = vrot.lane.b32.xlu0 %v668, 120
    %v670 = vpop.permute.xlu0 %669
    %v672 = vsel %vm288, %v665, 0
    %v675 = vsel %vm288, %v670, 0
    %677 = vmatpush.bf16.xpose.msra.mxu0 0
    %678 = vmatpush.bf16.xpose.msra.mxu0 0
    %679 = vmatpush.bf16.xpose.msra.mxu0 0
    %680 = vmatpush.bf16.xpose.msra.mxu0 0
    %681 = vmatpush.bf16.xpose.msra.mxu0 0
    %682 = vmatpush.bf16.xpose.msra.mxu0 0
    %683 = vmatpush.bf16.xpose.msra.mxu0 0
    %684 = vmatpush.bf16.xpose.msra.mxu0 %v675
    %685 = vmatmul.bf16.gmra.mxu0 %v672
    %v686 = vpop.f32.mrf.mxu0
    %v687 = vadd.f32 0.0, %v686
    %v688 = vpop.f32.mrf.mxu0
    %689 = vdwg.mxu0
    %v690 = vsel %vm288, %v687, -inf
    %691 = vmax.xlane.f32.xlu0 %v690
    %v692 = vpop.xlane.xlu0 %691
    %v693 = vsub.f32 %v687, %v692
    %v694 = vmul.f32 %v693, 1.442695
    %v695 = vpow.pop %v694
    %v696 = vsel %vm288, %v695, 0.0
    %697 = vadd.xlane.f32.xlu0 %v696
    %v698 = vpop.xlane.xlu0 %697
    %v699 = vrcp.pop %v698
    %v700 = vmul.f32 %v695, %v699
    %v701 = vpack.c.bf16 %v700, %v700
    %v703 = vunpack.c.l.b16 %v287
    %v704 = vpack.c.b16 %v703, %v703
    %705 = vrot.lane.b32.xlu0 %v704, 120
    %v706 = vpop.permute.xlu0 %705
    %v708 = vsel %vm288, %v701, 0
    %v711 = vsel %vm323, %v706, 0
    %713 = vmatpush.bf16.msra.mxu0 0
    %714 = vmatpush.bf16.msra.mxu0 0
    %715 = vmatpush.bf16.msra.mxu0 0
    %716 = vmatpush.bf16.msra.mxu0 0
    %717 = vmatpush.bf16.msra.mxu0 0
    %718 = vmatpush.bf16.msra.mxu0 0
    %719 = vmatpush.bf16.msra.mxu0 0
    %720 = vmatpush.bf16.msra.mxu0 %v711
    %721 = vmatmul.bf16.gmra.mxu0 %v708
    %v722 = vpop.f32.mrf.mxu0
    %v723 = vadd.f32 0.0, %v722
    %v724 = vpop.f32.mrf.mxu0
    %725 = vdwg.mxu0
    %v726 = vpack.c.bf16 %v723, %v723
    %v727 = vld [vmem:[#allocation13 + $0x4] sm:$0xf]
    %v729 = vsel %vm288, %v726, 0
    %v732 = vsel %vm323, %v727, 0
    %734 = vmatpush.bf16.msra.mxu0 0
    %735 = vmatpush.bf16.msra.mxu0 0
    %736 = vmatpush.bf16.msra.mxu0 0
    %737 = vmatpush.bf16.msra.mxu0 0
    %738 = vmatpush.bf16.msra.mxu0 0
    %739 = vmatpush.bf16.msra.mxu0 0
    %740 = vmatpush.bf16.msra.mxu0 0
    %741 = vmatpush.bf16.msra.mxu0 %v732
    %742 = vmatmul.bf16.gmra.mxu0 %v729
    %v743 = vpop.f32.mrf.mxu0
    %v744 = vadd.f32 0.0, %v743
    %v745 = vpop.f32.mrf.mxu0
    %746 = vdwg.mxu0
    %v748 = vsel %vm288, %v659, 0
    %v751 = vsel %vm323, %v660, 0
    %753 = vmatpush.bf16.msra.mxu0 0
    %754 = vmatpush.bf16.msra.mxu0 0
    %755 = vmatpush.bf16.msra.mxu0 0
    %756 = vmatpush.bf16.msra.mxu0 0
    %757 = vmatpush.bf16.msra.mxu0 0
    %758 = vmatpush.bf16.msra.mxu0 0
    %759 = vmatpush.bf16.msra.mxu0 0
    %760 = vmatpush.bf16.msra.mxu0 %v751
    %761 = vmatmul.bf16.gmra.mxu0 %v748
    %v762 = vpop.f32.mrf.mxu0
    %v763 = vadd.f32 %v744, %v762
    %v764 = vpop.f32.mrf.mxu0
    %765 = vdwg.mxu0
    %766 = vrot.lane.b32.xlu0 %v663, 112
    %v767 = vpop.permute.xlu0 %766
    %768 = vrot.lane.b32.xlu0 %v668, 112
    %v769 = vpop.permute.xlu0 %768
    %v771 = vsel %vm288, %v767, 0
    %v774 = vsel %vm288, %v769, 0
    %776 = vmatpush.bf16.xpose.msra.mxu0 0
    %777 = vmatpush.bf16.xpose.msra.mxu0 0
    %778 = vmatpush.bf16.xpose.msra.mxu0 0
    %779 = vmatpush.bf16.xpose.msra.mxu0 0
    %780 = vmatpush.bf16.xpose.msra.mxu0 0
    %781 = vmatpush.bf16.xpose.msra.mxu0 0
    %782 = vmatpush.bf16.xpose.msra.mxu0 0
    %783 = vmatpush.bf16.xpose.msra.mxu0 %v774
    %784 = vmatmul.bf16.gmra.mxu0 %v771
    %v785 = vpop.f32.mrf.mxu0
    %v786 = vadd.f32 0.0, %v785
    %v787 = vpop.f32.mrf.mxu0
    %788 = vdwg.mxu0
    %v789 = vsel %vm288, %v786, -inf
    %790 = vmax.xlane.f32.xlu0 %v789
    %v791 = vpop.xlane.xlu0 %790
    %v792 = vsub.f32 %v786, %v791
    %v793 = vmul.f32 %v792, 1.442695
    %v794 = vpow.pop %v793
    %v795 = vsel %vm288, %v794, 0.0
    %796 = vadd.xlane.f32.xlu0 %v795
    %v797 = vpop.xlane.xlu0 %796
    %v798 = vrcp.pop %v797
    %v799 = vmul.f32 %v794, %v798
    %v800 = vpack.c.bf16 %v799, %v799
    %801 = vrot.lane.b32.xlu0 %v704, 112
    %v802 = vpop.permute.xlu0 %801
    %v804 = vsel %vm288, %v800, 0
    %v807 = vsel %vm323, %v802, 0
    %809 = vmatpush.bf16.msra.mxu0 0
    %810 = vmatpush.bf16.msra.mxu0 0
    %811 = vmatpush.bf16.msra.mxu0 0
    %812 = vmatpush.bf16.msra.mxu0 0
    %813 = vmatpush.bf16.msra.mxu0 0
    %814 = vmatpush.bf16.msra.mxu0 0
    %815 = vmatpush.bf16.msra.mxu0 0
    %816 = vmatpush.bf16.msra.mxu0 %v807
    %817 = vmatmul.bf16.gmra.mxu0 %v804
    %v818 = vpop.f32.mrf.mxu0
    %v819 = vadd.f32 0.0, %v818
    %v820 = vpop.f32.mrf.mxu0
    %821 = vdwg.mxu0
    %v822 = vpack.c.bf16 %v819, %v819
    %v823 = vld [vmem:[#allocation13 + $0x8] sm:$0xf]
    %v825 = vsel %vm288, %v822, 0
    %v828 = vsel %vm323, %v823, 0
    %830 = vmatpush.bf16.msra.mxu0 0
    %831 = vmatpush.bf16.msra.mxu0 0
    %832 = vmatpush.bf16.msra.mxu0 0
    %833 = vmatpush.bf16.msra.mxu0 0
    %834 = vmatpush.bf16.msra.mxu0 0
    %835 = vmatpush.bf16.msra.mxu0 0
    %836 = vmatpush.bf16.msra.mxu0 0
    %837 = vmatpush.bf16.msra.mxu0 %v828
    %838 = vmatmul.bf16.gmra.mxu0 %v825
    %v839 = vpop.f32.mrf.mxu0
    %v840 = vadd.f32 0.0, %v839
    %v841 = vpop.f32.mrf.mxu0
    %842 = vdwg.mxu0
    %v843 = vadd.f32 %v763, %v840
    %844 = vrot.lane.b32.xlu0 %v663, 104
    %v845 = vpop.permute.xlu0 %844
    %846 = vrot.lane.b32.xlu0 %v668, 104
    %v847 = vpop.permute.xlu0 %846
    %v849 = vsel %vm288, %v845, 0
    %v852 = vsel %vm288, %v847, 0
    %854 = vmatpush.bf16.xpose.msra.mxu0 0
    %855 = vmatpush.bf16.xpose.msra.mxu0 0
    %856 = vmatpush.bf16.xpose.msra.mxu0 0
    %857 = vmatpush.bf16.xpose.msra.mxu0 0
    %858 = vmatpush.bf16.xpose.msra.mxu0 0
    %859 = vmatpush.bf16.xpose.msra.mxu0 0
    %860 = vmatpush.bf16.xpose.msra.mxu0 0
    %861 = vmatpush.bf16.xpose.msra.mxu0 %v852
    %862 = vmatmul.bf16.gmra.mxu0 %v849
    %v863 = vpop.f32.mrf.mxu0
    %v864 = vadd.f32 0.0, %v863
    %v865 = vpop.f32.mrf.mxu0
    %866 = vdwg.mxu0
    %v867 = vsel %vm288, %v864, -inf
    %868 = vmax.xlane.f32.xlu0 %v867
    %v869 = vpop.xlane.xlu0 %868
    %v870 = vsub.f32 %v864, %v869
    %v871 = vmul.f32 %v870, 1.442695
    %v872 = vpow.pop %v871
    %v873 = vsel %vm288, %v872, 0.0
    %874 = vadd.xlane.f32.xlu0 %v873
    %v875 = vpop.xlane.xlu0 %874
    %v876 = vrcp.pop %v875
    %v877 = vmul.f32 %v872, %v876
    %v878 = vpack.c.bf16 %v877, %v877
    %879 = vrot.lane.b32.xlu0 %v704, 104
    %v880 = vpop.permute.xlu0 %879
    %v882 = vsel %vm288, %v878, 0
    %v885 = vsel %vm323, %v880, 0
    %887 = vmatpush.bf16.msra.mxu0 0
    %888 = vmatpush.bf16.msra.mxu0 0
    %889 = vmatpush.bf16.msra.mxu0 0
    %890 = vmatpush.bf16.msra.mxu0 0
    %891 = vmatpush.bf16.msra.mxu0 0
    %892 = vmatpush.bf16.msra.mxu0 0
    %893 = vmatpush.bf16.msra.mxu0 0
    %894 = vmatpush.bf16.msra.mxu0 %v885
    %895 = vmatmul.bf16.gmra.mxu0 %v882
    %v896 = vpop.f32.mrf.mxu0
    %v897 = vadd.f32 0.0, %v896
    %v898 = vpop.f32.mrf.mxu0
    %899 = vdwg.mxu0
    %v900 = vpack.c.bf16 %v897, %v897
    %v901 = vld [vmem:[#allocation13 + $0xc] sm:$0xf]
    %v903 = vsel %vm288, %v900, 0
    %v906 = vsel %vm323, %v901, 0
    %908 = vmatpush.bf16.msra.mxu0 0
    %909 = vmatpush.bf16.msra.mxu0 0
    %910 = vmatpush.bf16.msra.mxu0 0
    %911 = vmatpush.bf16.msra.mxu0 0
    %912 = vmatpush.bf16.msra.mxu0 0
    %913 = vmatpush.bf16.msra.mxu0 0
    %914 = vmatpush.bf16.msra.mxu0 0
    %915 = vmatpush.bf16.msra.mxu0 %v906
    %916 = vmatmul.bf16.gmra.mxu0 %v903
    %v917 = vpop.f32.mrf.mxu0
    %v918 = vadd.f32 0.0, %v917
    %v919 = vpop.f32.mrf.mxu0
    %920 = vdwg.mxu0
    %v921 = vadd.f32 %v843, %v918
    %v922 = vld [vmem:[%s10] sm:$0x1]
    %v924 = vperm.slane %v922, 0
    %v926 = vadd.f32 %v921, %v924
    %927 = vst.msk [vmem:[#allocation14 + $0x8] sm:$0xff] %vm176, %v926
    // Predicated region
    $region74: #{tpu_custom_call.1} parent=1 // pred_check
      _
    $region75: #{tpu_custom_call.1} parent=1 // pred_check_branch
      %929 = sbr.rel (0) target = $region77
    $region76: #{tpu_custom_call.1} parent=1 // pred_region
      %931 = vsyncadd [#allocation4], 0
      %s932 = sshll.u32 [#allocation14], 4
      %s933 = int_to_ptr.vmem [resolvable:$true] %s932
      %s934 = sshll.u32 %s11, 4
      %s935 = int_to_ptr.hbm [resolvable:$true] %s934
      %940 = dma.vmem_to_hbm [thread:$0]  %s933, 256, %s935, [#allocation4], 128, 128, 8
    $region77: #{tpu_custom_call.1} parent=1 // pred_fallthru
      _
    // Predicated region
    $region78: #{tpu_custom_call.1} parent=1 // pred_check
      _
    $region79: #{tpu_custom_call.1} parent=1 // pred_check_branch
      %942 = sbr.rel (0) target = $region81
    $region80: #{tpu_custom_call.1} parent=1 // pred_region
      %944 = dma.done [#allocation4], 256
    $region81: #{tpu_custom_call.1} parent=1 // pred_fallthru
      _
    %945 = vsyncpa [#allocation3], 1
    %946 = vsyncpa [#allocation6], 1
    %947 = vsyncpa [#allocation9], 1
    %948 = vsyncpa [#allocation12], 1
    %949 = vsyncpa [#allocation4], 1

</llo_original>
